<compile_context>
chip_gen: v7x
topology: tpu7x:2x2x1
jax: 0.10.0
libtpu: 0.0.40
codegen_flags: <defaults>
</compile_context>

<pallas_src>
import functools

import jax
import jax.numpy as jnp
from jax.experimental import pallas as pl
from jax.experimental.pallas import tpu as pltpu

C1 = 1e-4   # SSIM constants from the module __init__ defaults
C2 = 9e-4


# ---------------------------------------------------------------------------
# Separable 3x3 window sums with in-VMEM halo construction (no padded HBM copies)
# ---------------------------------------------------------------------------

def _row_sum3_reflect(a):
    """3-tap window sum along H (sublane axis) with 1-px reflection."""
    up = jnp.concatenate([a[:, :, 1:2, :], a[:, :, :-1, :]], axis=2)    # a[i-1]; row 0 -> row 1
    dn = jnp.concatenate([a[:, :, 1:, :], a[:, :, -2:-1, :]], axis=2)   # a[i+1]; row H-1 -> row H-2
    return a + up + dn


def _row_sum3_zero(a):
    """3-tap window sum along H with zero padding."""
    z = jnp.zeros_like(a[:, :, :1, :])
    up = jnp.concatenate([z, a[:, :, :-1, :]], axis=2)
    dn = jnp.concatenate([a[:, :, 1:, :], z], axis=2)
    return a + up + dn


def _col_sum3_reflect(a, true_w, last_col):
    """3-tap window sum along W (lane axis) with 1-px reflection at cols 0 / true_w-1.

    `a` is lane-padded to a multiple of 128; lanes >= true_w are don't-care.
    """
    lf = jnp.concatenate([a[..., 1:2], a[..., :-1]], axis=3)            # a[j-1]; col 0 -> col 1
    rt = jnp.concatenate([a[..., 1:], a[..., :1]], axis=3)              # a[j+1] (wrapped)
    rt = jnp.where(last_col, a[..., true_w - 2:true_w - 1], rt)         # reflect at col true_w-1
    return a + lf + rt


def _col_sum3_zero(a):
    """3-tap window sum along W with zero padding (lane padding of `a` is already 0)."""
    z = jnp.zeros_like(a[..., :1])
    lf = jnp.concatenate([z, a[..., :-1]], axis=3)
    rt = jnp.concatenate([a[..., 1:], z], axis=3)
    return a + lf + rt


def _pool3_reflect(p, true_w, last_col):
    """3x3 stride-1 window SUM of p with 1-px reflection padding (valid lanes < true_w)."""
    return _col_sum3_reflect(_row_sum3_reflect(p), true_w, last_col)


def _pool3_zero(p):
    """3x3 stride-1 window SUM of p with zero padding."""
    return _col_sum3_zero(_row_sum3_zero(p))


# ---------------------------------------------------------------------------
# Kernel: one image (all C channels) per grid step, fully stateless.
# ---------------------------------------------------------------------------

def _weighted_ssim_kernel(x_ref, y_ref, w_ref, ssim_ref, avgw_ref, *, true_w):
    # x_ref, y_ref : [1, C, H, Wp]   (unpadded image, lane-padded to Wp = ceil(W/128)*128)
    # w_ref        : [1, 1, H, Wp]   (zero lane padding keeps the zero-pad avg pool exact)
    f32 = jnp.float32
    x = x_ref[...].astype(f32)
    y = y_ref[...].astype(f32)
    w = w_ref[...].astype(f32)

    H = x_ref.shape[2]
    wp_lanes = x_ref.shape[3]
    lane = jax.lax.broadcasted_iota(jnp.int32, (1, 1, H, wp_lanes), 3)
    last_col = lane == (true_w - 1)
    ninth = f32(1.0 / 9.0)

    # avg_w = F.avg_pool2d(w, 3, stride=1, padding=1) (zero pad, count_include_pad -> /9)
    avg_w = _pool3_zero(w) * ninth
    avgw_ref[...] = avg_w.astype(avgw_ref.dtype)

    # 1/(avg_w + 0.01): d >= 0.01, safe for the EUP approx reciprocal; two cheap
    # Newton steps make it f32-exact regardless of the seed accuracy.  Fold the
    # pool's 1/9 into the per-pixel scale once.
    d = avg_w + f32(0.01)
    inv_w = pl.reciprocal(d, approx=True)
    inv_w = inv_w * (f32(2.0) - d * inv_w)
    inv_w = inv_w * (f32(2.0) - d * inv_w)
    scale = inv_w * ninth

    # weighted_avgpool(a) = avg_pool3(reflect_pad(a * (w+0.01))) * inv_w
    #                     = pool3_reflect_sum(a * wgt) * scale
    # Ordered to shorten plane lifetimes (review): x-terms first, then y / cross.
    wgt = w + f32(0.01)
    xw = x * wgt
    mu_x = _pool3_reflect(xw, true_w, last_col) * scale
    sigma_x = _pool3_reflect(x * xw, true_w, last_col) * scale - mu_x * mu_x
    yw = y * wgt
    mu_y = _pool3_reflect(yw, true_w, last_col) * scale
    sigma_y = _pool3_reflect(y * yw, true_w, last_col) * scale - mu_y * mu_y
    sigma_xy = _pool3_reflect(x * yw, true_w, last_col) * scale - mu_x * mu_y

    # Finite C1, C2 -> the general branch of the PyTorch forward.
    ssim_n = (2.0 * sigma_xy + C2) * (2.0 * mu_x * mu_y + C1)
    ssim_d = (sigma_x + sigma_y + C2) * (mu_x * mu_x + mu_y * mu_y + C1)
    ssim = ssim_n / ssim_d            # exact divide: ssim_d can get tiny (review concern)

    ssim_ref[...] = jnp.clip((1.0 - ssim) * 0.5, 0.0, 1.0).astype(ssim_ref.dtype)


def _vmem_limit_bytes():
    """Generation-aware scoped-VMEM budget (v5e/v6e: 128 MiB, v7x: 64 MiB physical)."""
    try:
        cap = int(pltpu.get_tpu_info().vmem_capacity_bytes)
    except Exception:   # not on a real TPU (e.g. interpret mode) or older jax
        cap = 64 * 1024 * 1024
    return max(32 * 1024 * 1024, min(cap * 3 // 4, 100 * 1024 * 1024))


@jax.jit
def weighted_ssim(x, y, w):
    """x, y: [B, C, H, W]; w: [B, 1, H, W]. Returns (clamped ssim distance, avg_w)."""
    B, C, H, W = x.shape
    assert w.shape == (B, 1, H, W), w.shape

    # Lane-dense layout: pad W to a multiple of 128 (no-op for typical image widths)
    # so output stores are unmasked and lane shifts stay 128-aligned.
    Wp = ((W + 127) // 128) * 128
    if Wp != W:
        padw = ((0, 0), (0, 0), (0, 0), (0, Wp - W))
        x_in = jnp.pad(x, padw)
        y_in = jnp.pad(y, padw)
        w_in = jnp.pad(w, padw)     # zero pad keeps the zero-padded avg pool exact
    else:
        x_in, y_in, w_in = x, y, w

    kernel = functools.partial(_weighted_ssim_kernel, true_w=W)
    block_xc = pl.BlockSpec((1, C, H, Wp), lambda b: (b, 0, 0, 0))
    block_w1 = pl.BlockSpec((1, 1, H, Wp), lambda b: (b, 0, 0, 0))

    ssim_p, avgw_p = pl.pallas_call(
        kernel,
        out_shape=(jax.ShapeDtypeStruct((B, C, H, Wp), x.dtype),
                   jax.ShapeDtypeStruct((B, 1, H, Wp), w.dtype)),
        grid=(B,),
        in_specs=[block_xc, block_xc, block_w1],
        out_specs=(block_xc, block_w1),
        compiler_params=pltpu.CompilerParams(
            dimension_semantics=("parallel",),
            vmem_limit_bytes=_vmem_limit_bytes()),
    )(x_in, y_in, w_in)

    if Wp != W:
        ssim_p = ssim_p[..., :W]
        avgw_p = avgw_p[..., :W]
    return ssim_p, avgw_p


# ---------------------------------------------------------------------------
# Independent pure-JAX reference mirroring the PyTorch forward.
# ---------------------------------------------------------------------------

def ref_weighted_ssim(x, y, w):
    pad4 = ((0, 0), (0, 0), (1, 1), (1, 1))

    def pool_sum(a):
        return jax.lax.reduce_window(a, 0.0, jax.lax.add, (1, 1, 3, 3),
                                     (1, 1, 1, 1), "VALID")

    avg_w = pool_sum(jnp.pad(w, pad4)) / 9.0
    wp = w + 0.01
    inv_w = 1.0 / (avg_w + 0.01)

    def wpool(a):
        return pool_sum(jnp.pad(a * wp, pad4, mode="reflect")) / 9.0 * inv_w

    mu_x = wpool(x)
    mu_y = wpool(y)
    sigma_x = wpool(x * x) - mu_x ** 2
    sigma_y = wpool(y * y) - mu_y ** 2
    sigma_xy = wpool(x * y) - mu_x * mu_y
    ssim_n = (2 * sigma_xy + C2) * (2 * mu_x * mu_y + C1)
    ssim_d = (sigma_x + sigma_y + C2) * (mu_x ** 2 + mu_y ** 2 + C1)
    ssim = ssim_n / ssim_d
    return jnp.clip((1.0 - ssim) / 2.0, 0.0, 1.0), avg_w


if __name__ == "__main__":
    key = jax.random.PRNGKey(0)
    kx, ky, kw = jax.random.split(key, 3)
    B, C, H, W = 2, 3, 16, 16          # x, y: [B,3,H,W]; w: [B,1,H,W] per the module docstring
    x = jax.random.uniform(kx, (B, C, H, W), jnp.float32)
    y = jax.random.uniform(ky, (B, C, H, W), jnp.float32)
    w = jax.random.uniform(kw, (B, 1, H, W), jnp.float32)

    ssim, avg_w = weighted_ssim(x, y, w)
    jax.block_until_ready((ssim, avg_w))

    r_ssim, r_avg_w = ref_weighted_ssim(x, y, w)
    assert ssim.shape == (B, C, H, W) and avg_w.shape == (B, 1, H, W)
    assert jnp.allclose(avg_w, r_avg_w, atol=1e-5, rtol=1e-5), \
        float(jnp.max(jnp.abs(avg_w - r_avg_w)))
    assert jnp.allclose(ssim, r_ssim, atol=1e-5, rtol=1e-5), \
        float(jnp.max(jnp.abs(ssim - r_ssim)))
    print("KERNEL_OK")
</pallas_src>

<mosaic_0001>
module attributes {stable_mosaic.version = 11 : i64} {
  func.func @_weighted_ssim_kernel(%arg0: i32, %arg1: memref<1x3x16x128xf32, #tpu.memory_space<vmem>>, %arg2: memref<1x3x16x128xf32, #tpu.memory_space<vmem>>, %arg3: memref<1x1x16x128xf32, #tpu.memory_space<vmem>>, %arg4: memref<1x3x16x128xf32, #tpu.memory_space<vmem>>, %arg5: memref<1x1x16x128xf32, #tpu.memory_space<vmem>>) attributes {dimension_semantics = [#tpu.dimension_semantics<parallel>], iteration_bounds = array<i64: 2>, scalar_prefetch = 0 : i64, scratch_operands = 0 : i64, tpu.core_type = #tpu.core_type<tc>, window_params = [{transform_indices = @transform_0, window_bounds = array<i64: 1, 3, 16, 128>}, {transform_indices = @transform_1, window_bounds = array<i64: 1, 3, 16, 128>}, {transform_indices = @transform_2, window_bounds = array<i64: 1, 1, 16, 128>}, {transform_indices = @transform_3, window_bounds = array<i64: 1, 3, 16, 128>}, {transform_indices = @transform_4, window_bounds = array<i64: 1, 1, 16, 128>}]} {
    %c0 = arith.constant 0 : index
    %c0_0 = arith.constant 0 : index
    %c0_1 = arith.constant 0 : index
    %c0_2 = arith.constant 0 : index
    %0 = vector.load %arg1[%c0, %c0_0, %c0_1, %c0_2] : memref<1x3x16x128xf32, #tpu.memory_space<vmem>>, vector<1x3x16x128xf32>
    %c0_3 = arith.constant 0 : index
    %c0_4 = arith.constant 0 : index
    %c0_5 = arith.constant 0 : index
    %c0_6 = arith.constant 0 : index
    %1 = vector.load %arg2[%c0_3, %c0_4, %c0_5, %c0_6] : memref<1x3x16x128xf32, #tpu.memory_space<vmem>>, vector<1x3x16x128xf32>
    %c0_7 = arith.constant 0 : index
    %c0_8 = arith.constant 0 : index
    %c0_9 = arith.constant 0 : index
    %c0_10 = arith.constant 0 : index
    %2 = vector.load %arg3[%c0_7, %c0_8, %c0_9, %c0_10] : memref<1x1x16x128xf32, #tpu.memory_space<vmem>>, vector<1x1x16x128xf32>
    %3 = tpu.iota {dimensions = array<i32: 3>} : vector<1x1x16x128xi32>
    %c15_i32 = arith.constant 15 : i32
    %4 = vector.broadcast %c15_i32 : i32 to vector<1x1x16x128xi32>
    %5 = arith.cmpi eq, %3, %4 : vector<1x1x16x128xi32>
    %cst = arith.constant 0.000000e+00 : f32
    %6 = vector.broadcast %cst : f32 to vector<1x1x1x128xf32>
    %7 = vector.extract_strided_slice %2 {offsets = [0, 0, 0, 0], sizes = [1, 1, 15, 128], strides = [1, 1, 1, 1]} : vector<1x1x16x128xf32> to vector<1x1x15x128xf32>
    %8 = tpu.concatenate %6, %7 in 2 : vector<1x1x1x128xf32>, vector<1x1x15x128xf32> -> vector<1x1x16x128xf32>
    %9 = vector.extract_strided_slice %2 {offsets = [0, 0, 1, 0], sizes = [1, 1, 15, 128], strides = [1, 1, 1, 1]} : vector<1x1x16x128xf32> to vector<1x1x15x128xf32>
    %10 = tpu.concatenate %9, %6 in 2 : vector<1x1x15x128xf32>, vector<1x1x1x128xf32> -> vector<1x1x16x128xf32>
    %11 = arith.addf %2, %8 : vector<1x1x16x128xf32>
    %12 = arith.addf %11, %10 : vector<1x1x16x128xf32>
    %cst_11 = arith.constant 0.000000e+00 : f32
    %13 = vector.broadcast %cst_11 : f32 to vector<1x1x16x1xf32>
    %14 = vector.extract_strided_slice %12 {offsets = [0, 0, 0, 0], sizes = [1, 1, 16, 127], strides = [1, 1, 1, 1]} : vector<1x1x16x128xf32> to vector<1x1x16x127xf32>
    %15 = tpu.concatenate %13, %14 in 3 : vector<1x1x16x1xf32>, vector<1x1x16x127xf32> -> vector<1x1x16x128xf32>
    %16 = vector.extract_strided_slice %12 {offsets = [0, 0, 0, 1], sizes = [1, 1, 16, 127], strides = [1, 1, 1, 1]} : vector<1x1x16x128xf32> to vector<1x1x16x127xf32>
    %17 = tpu.concatenate %16, %13 in 3 : vector<1x1x16x127xf32>, vector<1x1x16x1xf32> -> vector<1x1x16x128xf32>
    %18 = arith.addf %12, %15 : vector<1x1x16x128xf32>
    %19 = arith.addf %18, %17 : vector<1x1x16x128xf32>
    %cst_12 = arith.constant 0.111111112 : f32
    %20 = vector.broadcast %cst_12 : f32 to vector<1x1x16x128xf32>
    %21 = arith.mulf %19, %20 : vector<1x1x16x128xf32>
    %c0_13 = arith.constant 0 : index
    %c0_14 = arith.constant 0 : index
    %c0_15 = arith.constant 0 : index
    %c0_16 = arith.constant 0 : index
    %22 = vector.load %arg5[%c0_13, %c0_14, %c0_15, %c0_16] : memref<1x1x16x128xf32, #tpu.memory_space<vmem>>, vector<1x1x16x128xf32>
    tpu.vector_store %arg5[%c0_13, %c0_14, %c0_15, %c0_16], %21 {strides = array<i32>} : memref<1x1x16x128xf32, #tpu.memory_space<vmem>>, vector<1x1x16x128xf32>,
    %cst_17 = arith.constant 0.00999999977 : f32
    %23 = vector.broadcast %cst_17 : f32 to vector<1x1x16x128xf32>
    %24 = arith.addf %21, %23 : vector<1x1x16x128xf32>
    %25 = tpu.reciprocal %24 {approx = true} : vector<1x1x16x128xf32> -> vector<1x1x16x128xf32>
    %26 = arith.mulf %24, %25 : vector<1x1x16x128xf32>
    %cst_18 = arith.constant 2.000000e+00 : f32
    %27 = vector.broadcast %cst_18 : f32 to vector<1x1x16x128xf32>
    %28 = arith.subf %27, %26 : vector<1x1x16x128xf32>
    %29 = arith.mulf %25, %28 : vector<1x1x16x128xf32>
    %30 = arith.mulf %24, %29 : vector<1x1x16x128xf32>
    %cst_19 = arith.constant 2.000000e+00 : f32
    %31 = vector.broadcast %cst_19 : f32 to vector<1x1x16x128xf32>
    %32 = arith.subf %31, %30 : vector<1x1x16x128xf32>
    %33 = arith.mulf %29, %32 : vector<1x1x16x128xf32>
    %cst_20 = arith.constant 0.111111112 : f32
    %34 = vector.broadcast %cst_20 : f32 to vector<1x1x16x128xf32>
    %35 = arith.mulf %33, %34 : vector<1x1x16x128xf32>
    %cst_21 = arith.constant 0.00999999977 : f32
    %36 = vector.broadcast %cst_21 : f32 to vector<1x1x16x128xf32>
    %37 = arith.addf %2, %36 : vector<1x1x16x128xf32>
    %38 = vector.broadcast %37 : vector<1x1x16x128xf32> to vector<1x3x16x128xf32>
    %39 = arith.mulf %0, %38 : vector<1x3x16x128xf32>
    %40 = vector.extract_strided_slice %39 {offsets = [0, 0, 1, 0], sizes = [1, 3, 1, 128], strides = [1, 1, 1, 1]} : vector<1x3x16x128xf32> to vector<1x3x1x128xf32>
    %41 = vector.extract_strided_slice %39 {offsets = [0, 0, 0, 0], sizes = [1, 3, 15, 128], strides = [1, 1, 1, 1]} : vector<1x3x16x128xf32> to vector<1x3x15x128xf32>
    %42 = tpu.concatenate %40, %41 in 2 : vector<1x3x1x128xf32>, vector<1x3x15x128xf32> -> vector<1x3x16x128xf32>
    %43 = vector.extract_strided_slice %39 {offsets = [0, 0, 1, 0], sizes = [1, 3, 15, 128], strides = [1, 1, 1, 1]} : vector<1x3x16x128xf32> to vector<1x3x15x128xf32>
    %44 = vector.extract_strided_slice %39 {offsets = [0, 0, 14, 0], sizes = [1, 3, 1, 128], strides = [1, 1, 1, 1]} : vector<1x3x16x128xf32> to vector<1x3x1x128xf32>
    %45 = tpu.concatenate %43, %44 in 2 : vector<1x3x15x128xf32>, vector<1x3x1x128xf32> -> vector<1x3x16x128xf32>
    %46 = arith.addf %39, %42 : vector<1x3x16x128xf32>
    %47 = arith.addf %46, %45 : vector<1x3x16x128xf32>
    %48 = vector.extract_strided_slice %47 {offsets = [0, 0, 0, 1], sizes = [1, 3, 16, 1], strides = [1, 1, 1, 1]} : vector<1x3x16x128xf32> to vector<1x3x16x1xf32>
    %49 = vector.extract_strided_slice %47 {offsets = [0, 0, 0, 0], sizes = [1, 3, 16, 127], strides = [1, 1, 1, 1]} : vector<1x3x16x128xf32> to vector<1x3x16x127xf32>
    %50 = tpu.concatenate %48, %49 in 3 : vector<1x3x16x1xf32>, vector<1x3x16x127xf32> -> vector<1x3x16x128xf32>
    %51 = vector.extract_strided_slice %47 {offsets = [0, 0, 0, 1], sizes = [1, 3, 16, 127], strides = [1, 1, 1, 1]} : vector<1x3x16x128xf32> to vector<1x3x16x127xf32>
    %52 = vector.extract_strided_slice %47 {offsets = [0, 0, 0, 0], sizes = [1, 3, 16, 1], strides = [1, 1, 1, 1]} : vector<1x3x16x128xf32> to vector<1x3x16x1xf32>
    %53 = tpu.concatenate %51, %52 in 3 : vector<1x3x16x127xf32>, vector<1x3x16x1xf32> -> vector<1x3x16x128xf32>
    %54 = vector.extract_strided_slice %47 {offsets = [0, 0, 0, 14], sizes = [1, 3, 16, 1], strides = [1, 1, 1, 1]} : vector<1x3x16x128xf32> to vector<1x3x16x1xf32>
    %55 = vector.shape_cast %5 : vector<1x1x16x128xi1> to vector<1x1x16x128xi1>
    %56 = vector.broadcast %55 : vector<1x1x16x128xi1> to vector<1x3x16x128xi1>
    %57 = vector.shape_cast %54 : vector<1x3x16x1xf32> to vector<1x3x16x1xf32>
    %58 = vector.broadcast %57 : vector<1x3x16x1xf32> to vector<1x3x16x128xf32>
    %59 = arith.select %56, %58, %53 : vector<1x3x16x128xi1>, vector<1x3x16x128xf32>
    %60 = arith.addf %47, %50 : vector<1x3x16x128xf32>
    %61 = arith.addf %60, %59 : vector<1x3x16x128xf32>
    %62 = vector.broadcast %35 : vector<1x1x16x128xf32> to vector<1x3x16x128xf32>
    %63 = arith.mulf %61, %62 : vector<1x3x16x128xf32>
    %64 = arith.mulf %0, %39 : vector<1x3x16x128xf32>
    %65 = vector.extract_strided_slice %64 {offsets = [0, 0, 1, 0], sizes = [1, 3, 1, 128], strides = [1, 1, 1, 1]} : vector<1x3x16x128xf32> to vector<1x3x1x128xf32>
    %66 = vector.extract_strided_slice %64 {offsets = [0, 0, 0, 0], sizes = [1, 3, 15, 128], strides = [1, 1, 1, 1]} : vector<1x3x16x128xf32> to vector<1x3x15x128xf32>
    %67 = tpu.concatenate %65, %66 in 2 : vector<1x3x1x128xf32>, vector<1x3x15x128xf32> -> vector<1x3x16x128xf32>
    %68 = vector.extract_strided_slice %64 {offsets = [0, 0, 1, 0], sizes = [1, 3, 15, 128], strides = [1, 1, 1, 1]} : vector<1x3x16x128xf32> to vector<1x3x15x128xf32>
    %69 = vector.extract_strided_slice %64 {offsets = [0, 0, 14, 0], sizes = [1, 3, 1, 128], strides = [1, 1, 1, 1]} : vector<1x3x16x128xf32> to vector<1x3x1x128xf32>
    %70 = tpu.concatenate %68, %69 in 2 : vector<1x3x15x128xf32>, vector<1x3x1x128xf32> -> vector<1x3x16x128xf32>
    %71 = arith.addf %64, %67 : vector<1x3x16x128xf32>
    %72 = arith.addf %71, %70 : vector<1x3x16x128xf32>
    %73 = vector.extract_strided_slice %72 {offsets = [0, 0, 0, 1], sizes = [1, 3, 16, 1], strides = [1, 1, 1, 1]} : vector<1x3x16x128xf32> to vector<1x3x16x1xf32>
    %74 = vector.extract_strided_slice %72 {offsets = [0, 0, 0, 0], sizes = [1, 3, 16, 127], strides = [1, 1, 1, 1]} : vector<1x3x16x128xf32> to vector<1x3x16x127xf32>
    %75 = tpu.concatenate %73, %74 in 3 : vector<1x3x16x1xf32>, vector<1x3x16x127xf32> -> vector<1x3x16x128xf32>
    %76 = vector.extract_strided_slice %72 {offsets = [0, 0, 0, 1], sizes = [1, 3, 16, 127], strides = [1, 1, 1, 1]} : vector<1x3x16x128xf32> to vector<1x3x16x127xf32>
    %77 = vector.extract_strided_slice %72 {offsets = [0, 0, 0, 0], sizes = [1, 3, 16, 1], strides = [1, 1, 1, 1]} : vector<1x3x16x128xf32> to vector<1x3x16x1xf32>
    %78 = tpu.concatenate %76, %77 in 3 : vector<1x3x16x127xf32>, vector<1x3x16x1xf32> -> vector<1x3x16x128xf32>
    %79 = vector.extract_strided_slice %72 {offsets = [0, 0, 0, 14], sizes = [1, 3, 16, 1], strides = [1, 1, 1, 1]} : vector<1x3x16x128xf32> to vector<1x3x16x1xf32>
    %80 = vector.shape_cast %5 : vector<1x1x16x128xi1> to vector<1x1x16x128xi1>
    %81 = vector.broadcast %80 : vector<1x1x16x128xi1> to vector<1x3x16x128xi1>
    %82 = vector.shape_cast %79 : vector<1x3x16x1xf32> to vector<1x3x16x1xf32>
    %83 = vector.broadcast %82 : vector<1x3x16x1xf32> to vector<1x3x16x128xf32>
    %84 = arith.select %81, %83, %78 : vector<1x3x16x128xi1>, vector<1x3x16x128xf32>
    %85 = arith.addf %72, %75 : vector<1x3x16x128xf32>
    %86 = arith.addf %85, %84 : vector<1x3x16x128xf32>
    %87 = vector.broadcast %35 : vector<1x1x16x128xf32> to vector<1x3x16x128xf32>
    %88 = arith.mulf %86, %87 : vector<1x3x16x128xf32>
    %89 = arith.mulf %63, %63 : vector<1x3x16x128xf32>
    %90 = arith.subf %88, %89 : vector<1x3x16x128xf32>
    %91 = vector.broadcast %37 : vector<1x1x16x128xf32> to vector<1x3x16x128xf32>
    %92 = arith.mulf %1, %91 : vector<1x3x16x128xf32>
    %93 = vector.extract_strided_slice %92 {offsets = [0, 0, 1, 0], sizes = [1, 3, 1, 128], strides = [1, 1, 1, 1]} : vector<1x3x16x128xf32> to vector<1x3x1x128xf32>
    %94 = vector.extract_strided_slice %92 {offsets = [0, 0, 0, 0], sizes = [1, 3, 15, 128], strides = [1, 1, 1, 1]} : vector<1x3x16x128xf32> to vector<1x3x15x128xf32>
    %95 = tpu.concatenate %93, %94 in 2 : vector<1x3x1x128xf32>, vector<1x3x15x128xf32> -> vector<1x3x16x128xf32>
    %96 = vector.extract_strided_slice %92 {offsets = [0, 0, 1, 0], sizes = [1, 3, 15, 128], strides = [1, 1, 1, 1]} : vector<1x3x16x128xf32> to vector<1x3x15x128xf32>
    %97 = vector.extract_strided_slice %92 {offsets = [0, 0, 14, 0], sizes = [1, 3, 1, 128], strides = [1, 1, 1, 1]} : vector<1x3x16x128xf32> to vector<1x3x1x128xf32>
    %98 = tpu.concatenate %96, %97 in 2 : vector<1x3x15x128xf32>, vector<1x3x1x128xf32> -> vector<1x3x16x128xf32>
    %99 = arith.addf %92, %95 : vector<1x3x16x128xf32>
    %100 = arith.addf %99, %98 : vector<1x3x16x128xf32>
    %101 = vector.extract_strided_slice %100 {offsets = [0, 0, 0, 1], sizes = [1, 3, 16, 1], strides = [1, 1, 1, 1]} : vector<1x3x16x128xf32> to vector<1x3x16x1xf32>
    %102 = vector.extract_strided_slice %100 {offsets = [0, 0, 0, 0], sizes = [1, 3, 16, 127], strides = [1, 1, 1, 1]} : vector<1x3x16x128xf32> to vector<1x3x16x127xf32>
    %103 = tpu.concatenate %101, %102 in 3 : vector<1x3x16x1xf32>, vector<1x3x16x127xf32> -> vector<1x3x16x128xf32>
    %104 = vector.extract_strided_slice %100 {offsets = [0, 0, 0, 1], sizes = [1, 3, 16, 127], strides = [1, 1, 1, 1]} : vector<1x3x16x128xf32> to vector<1x3x16x127xf32>
    %105 = vector.extract_strided_slice %100 {offsets = [0, 0, 0, 0], sizes = [1, 3, 16, 1], strides = [1, 1, 1, 1]} : vector<1x3x16x128xf32> to vector<1x3x16x1xf32>
    %106 = tpu.concatenate %104, %105 in 3 : vector<1x3x16x127xf32>, vector<1x3x16x1xf32> -> vector<1x3x16x128xf32>
    %107 = vector.extract_strided_slice %100 {offsets = [0, 0, 0, 14], sizes = [1, 3, 16, 1], strides = [1, 1, 1, 1]} : vector<1x3x16x128xf32> to vector<1x3x16x1xf32>
    %108 = vector.shape_cast %5 : vector<1x1x16x128xi1> to vector<1x1x16x128xi1>
    %109 = vector.broadcast %108 : vector<1x1x16x128xi1> to vector<1x3x16x128xi1>
    %110 = vector.shape_cast %107 : vector<1x3x16x1xf32> to vector<1x3x16x1xf32>
    %111 = vector.broadcast %110 : vector<1x3x16x1xf32> to vector<1x3x16x128xf32>
    %112 = arith.select %109, %111, %106 : vector<1x3x16x128xi1>, vector<1x3x16x128xf32>
    %113 = arith.addf %100, %103 : vector<1x3x16x128xf32>
    %114 = arith.addf %113, %112 : vector<1x3x16x128xf32>
    %115 = vector.broadcast %35 : vector<1x1x16x128xf32> to vector<1x3x16x128xf32>
    %116 = arith.mulf %114, %115 : vector<1x3x16x128xf32>
    %117 = arith.mulf %1, %92 : vector<1x3x16x128xf32>
    %118 = vector.extract_strided_slice %117 {offsets = [0, 0, 1, 0], sizes = [1, 3, 1, 128], strides = [1, 1, 1, 1]} : vector<1x3x16x128xf32> to vector<1x3x1x128xf32>
    %119 = vector.extract_strided_slice %117 {offsets = [0, 0, 0, 0], sizes = [1, 3, 15, 128], strides = [1, 1, 1, 1]} : vector<1x3x16x128xf32> to vector<1x3x15x128xf32>
    %120 = tpu.concatenate %118, %119 in 2 : vector<1x3x1x128xf32>, vector<1x3x15x128xf32> -> vector<1x3x16x128xf32>
    %121 = vector.extract_strided_slice %117 {offsets = [0, 0, 1, 0], sizes = [1, 3, 15, 128], strides = [1, 1, 1, 1]} : vector<1x3x16x128xf32> to vector<1x3x15x128xf32>
    %122 = vector.extract_strided_slice %117 {offsets = [0, 0, 14, 0], sizes = [1, 3, 1, 128], strides = [1, 1, 1, 1]} : vector<1x3x16x128xf32> to vector<1x3x1x128xf32>
    %123 = tpu.concatenate %121, %122 in 2 : vector<1x3x15x128xf32>, vector<1x3x1x128xf32> -> vector<1x3x16x128xf32>
    %124 = arith.addf %117, %120 : vector<1x3x16x128xf32>
    %125 = arith.addf %124, %123 : vector<1x3x16x128xf32>
    %126 = vector.extract_strided_slice %125 {offsets = [0, 0, 0, 1], sizes = [1, 3, 16, 1], strides = [1, 1, 1, 1]} : vector<1x3x16x128xf32> to vector<1x3x16x1xf32>
    %127 = vector.extract_strided_slice %125 {offsets = [0, 0, 0, 0], sizes = [1, 3, 16, 127], strides = [1, 1, 1, 1]} : vector<1x3x16x128xf32> to vector<1x3x16x127xf32>
    %128 = tpu.concatenate %126, %127 in 3 : vector<1x3x16x1xf32>, vector<1x3x16x127xf32> -> vector<1x3x16x128xf32>
    %129 = vector.extract_strided_slice %125 {offsets = [0, 0, 0, 1], sizes = [1, 3, 16, 127], strides = [1, 1, 1, 1]} : vector<1x3x16x128xf32> to vector<1x3x16x127xf32>
    %130 = vector.extract_strided_slice %125 {offsets = [0, 0, 0, 0], sizes = [1, 3, 16, 1], strides = [1, 1, 1, 1]} : vector<1x3x16x128xf32> to vector<1x3x16x1xf32>
    %131 = tpu.concatenate %129, %130 in 3 : vector<1x3x16x127xf32>, vector<1x3x16x1xf32> -> vector<1x3x16x128xf32>
    %132 = vector.extract_strided_slice %125 {offsets = [0, 0, 0, 14], sizes = [1, 3, 16, 1], strides = [1, 1, 1, 1]} : vector<1x3x16x128xf32> to vector<1x3x16x1xf32>
    %133 = vector.shape_cast %5 : vector<1x1x16x128xi1> to vector<1x1x16x128xi1>
    %134 = vector.broadcast %133 : vector<1x1x16x128xi1> to vector<1x3x16x128xi1>
    %135 = vector.shape_cast %132 : vector<1x3x16x1xf32> to vector<1x3x16x1xf32>
    %136 = vector.broadcast %135 : vector<1x3x16x1xf32> to vector<1x3x16x128xf32>
    %137 = arith.select %134, %136, %131 : vector<1x3x16x128xi1>, vector<1x3x16x128xf32>
    %138 = arith.addf %125, %128 : vector<1x3x16x128xf32>
    %139 = arith.addf %138, %137 : vector<1x3x16x128xf32>
    %140 = vector.broadcast %35 : vector<1x1x16x128xf32> to vector<1x3x16x128xf32>
    %141 = arith.mulf %139, %140 : vector<1x3x16x128xf32>
    %142 = arith.mulf %116, %116 : vector<1x3x16x128xf32>
    %143 = arith.subf %141, %142 : vector<1x3x16x128xf32>
    %144 = arith.mulf %0, %92 : vector<1x3x16x128xf32>
    %145 = vector.extract_strided_slice %144 {offsets = [0, 0, 1, 0], sizes = [1, 3, 1, 128], strides = [1, 1, 1, 1]} : vector<1x3x16x128xf32> to vector<1x3x1x128xf32>
    %146 = vector.extract_strided_slice %144 {offsets = [0, 0, 0, 0], sizes = [1, 3, 15, 128], strides = [1, 1, 1, 1]} : vector<1x3x16x128xf32> to vector<1x3x15x128xf32>
    %147 = tpu.concatenate %145, %146 in 2 : vector<1x3x1x128xf32>, vector<1x3x15x128xf32> -> vector<1x3x16x128xf32>
    %148 = vector.extract_strided_slice %144 {offsets = [0, 0, 1, 0], sizes = [1, 3, 15, 128], strides = [1, 1, 1, 1]} : vector<1x3x16x128xf32> to vector<1x3x15x128xf32>
    %149 = vector.extract_strided_slice %144 {offsets = [0, 0, 14, 0], sizes = [1, 3, 1, 128], strides = [1, 1, 1, 1]} : vector<1x3x16x128xf32> to vector<1x3x1x128xf32>
    %150 = tpu.concatenate %148, %149 in 2 : vector<1x3x15x128xf32>, vector<1x3x1x128xf32> -> vector<1x3x16x128xf32>
    %151 = arith.addf %144, %147 : vector<1x3x16x128xf32>
    %152 = arith.addf %151, %150 : vector<1x3x16x128xf32>
    %153 = vector.extract_strided_slice %152 {offsets = [0, 0, 0, 1], sizes = [1, 3, 16, 1], strides = [1, 1, 1, 1]} : vector<1x3x16x128xf32> to vector<1x3x16x1xf32>
    %154 = vector.extract_strided_slice %152 {offsets = [0, 0, 0, 0], sizes = [1, 3, 16, 127], strides = [1, 1, 1, 1]} : vector<1x3x16x128xf32> to vector<1x3x16x127xf32>
    %155 = tpu.concatenate %153, %154 in 3 : vector<1x3x16x1xf32>, vector<1x3x16x127xf32> -> vector<1x3x16x128xf32>
    %156 = vector.extract_strided_slice %152 {offsets = [0, 0, 0, 1], sizes = [1, 3, 16, 127], strides = [1, 1, 1, 1]} : vector<1x3x16x128xf32> to vector<1x3x16x127xf32>
    %157 = vector.extract_strided_slice %152 {offsets = [0, 0, 0, 0], sizes = [1, 3, 16, 1], strides = [1, 1, 1, 1]} : vector<1x3x16x128xf32> to vector<1x3x16x1xf32>
    %158 = tpu.concatenate %156, %157 in 3 : vector<1x3x16x127xf32>, vector<1x3x16x1xf32> -> vector<1x3x16x128xf32>
    %159 = vector.extract_strided_slice %152 {offsets = [0, 0, 0, 14], sizes = [1, 3, 16, 1], strides = [1, 1, 1, 1]} : vector<1x3x16x128xf32> to vector<1x3x16x1xf32>
    %160 = vector.shape_cast %5 : vector<1x1x16x128xi1> to vector<1x1x16x128xi1>
    %161 = vector.broadcast %160 : vector<1x1x16x128xi1> to vector<1x3x16x128xi1>
    %162 = vector.shape_cast %159 : vector<1x3x16x1xf32> to vector<1x3x16x1xf32>
    %163 = vector.broadcast %162 : vector<1x3x16x1xf32> to vector<1x3x16x128xf32>
    %164 = arith.select %161, %163, %158 : vector<1x3x16x128xi1>, vector<1x3x16x128xf32>
    %165 = arith.addf %152, %155 : vector<1x3x16x128xf32>
    %166 = arith.addf %165, %164 : vector<1x3x16x128xf32>
    %167 = vector.broadcast %35 : vector<1x1x16x128xf32> to vector<1x3x16x128xf32>
    %168 = arith.mulf %166, %167 : vector<1x3x16x128xf32>
    %169 = arith.mulf %63, %116 : vector<1x3x16x128xf32>
    %170 = arith.subf %168, %169 : vector<1x3x16x128xf32>
    %cst_22 = arith.constant 2.000000e+00 : f32
    %171 = vector.broadcast %cst_22 : f32 to vector<1x3x16x128xf32>
    %172 = arith.mulf %171, %170 : vector<1x3x16x128xf32>
    %cst_23 = arith.constant 8.99999984E-4 : f32
    %173 = vector.broadcast %cst_23 : f32 to vector<1x3x16x128xf32>
    %174 = arith.addf %172, %173 : vector<1x3x16x128xf32>
    %cst_24 = arith.constant 2.000000e+00 : f32
    %175 = vector.broadcast %cst_24 : f32 to vector<1x3x16x128xf32>
    %176 = arith.mulf %175, %63 : vector<1x3x16x128xf32>
    %177 = arith.mulf %176, %116 : vector<1x3x16x128xf32>
    %cst_25 = arith.constant 9.99999974E-5 : f32
    %178 = vector.broadcast %cst_25 : f32 to vector<1x3x16x128xf32>
    %179 = arith.addf %177, %178 : vector<1x3x16x128xf32>
    %180 = arith.mulf %174, %179 : vector<1x3x16x128xf32>
    %181 = arith.addf %90, %143 : vector<1x3x16x128xf32>
    %cst_26 = arith.constant 8.99999984E-4 : f32
    %182 = vector.broadcast %cst_26 : f32 to vector<1x3x16x128xf32>
    %183 = arith.addf %181, %182 : vector<1x3x16x128xf32>
    %184 = arith.mulf %63, %63 : vector<1x3x16x128xf32>
    %185 = arith.mulf %116, %116 : vector<1x3x16x128xf32>
    %186 = arith.addf %184, %185 : vector<1x3x16x128xf32>
    %cst_27 = arith.constant 9.99999974E-5 : f32
    %187 = vector.broadcast %cst_27 : f32 to vector<1x3x16x128xf32>
    %188 = arith.addf %186, %187 : vector<1x3x16x128xf32>
    %189 = arith.mulf %183, %188 : vector<1x3x16x128xf32>
    %190 = arith.divf %180, %189 : vector<1x3x16x128xf32>
    %cst_28 = arith.constant 1.000000e+00 : f32
    %191 = vector.broadcast %cst_28 : f32 to vector<1x3x16x128xf32>
    %192 = arith.subf %191, %190 : vector<1x3x16x128xf32>
    %cst_29 = arith.constant 5.000000e-01 : f32
    %193 = vector.broadcast %cst_29 : f32 to vector<1x3x16x128xf32>
    %194 = arith.mulf %192, %193 : vector<1x3x16x128xf32>
    %cst_30 = arith.constant 0.000000e+00 : f32
    %cst_31 = arith.constant 1.000000e+00 : f32
    %195 = vector.broadcast %cst_30 : f32 to vector<1x3x16x128xf32>
    %196 = arith.maximumf %195, %194 : vector<1x3x16x128xf32>
    %197 = vector.broadcast %cst_31 : f32 to vector<1x3x16x128xf32>
    %198 = arith.minimumf %197, %196 : vector<1x3x16x128xf32>
    %c0_32 = arith.constant 0 : index
    %c0_33 = arith.constant 0 : index
    %c0_34 = arith.constant 0 : index
    %c0_35 = arith.constant 0 : index
    %199 = vector.load %arg4[%c0_32, %c0_33, %c0_34, %c0_35] : memref<1x3x16x128xf32, #tpu.memory_space<vmem>>, vector<1x3x16x128xf32>
    tpu.vector_store %arg4[%c0_32, %c0_33, %c0_34, %c0_35], %198 {strides = array<i32>} : memref<1x3x16x128xf32, #tpu.memory_space<vmem>>, vector<1x3x16x128xf32>,
    return
  }
  func.func @transform_0(%arg0: i32) -> (i32, i32, i32, i32) {
    %c0_i32 = arith.constant 0 : i32
    %c0_i32_0 = arith.constant 0 : i32
    %c0_i32_1 = arith.constant 0 : i32
    %c0_i32_2 = arith.constant 0 : i32
    return %arg0, %c0_i32, %c0_i32_0, %c0_i32_1 : i32, i32, i32, i32
  }
  func.func @transform_1(%arg0: i32) -> (i32, i32, i32, i32) {
    %c0_i32 = arith.constant 0 : i32
    %c0_i32_0 = arith.constant 0 : i32
    %c0_i32_1 = arith.constant 0 : i32
    %c0_i32_2 = arith.constant 0 : i32
    return %arg0, %c0_i32, %c0_i32_0, %c0_i32_1 : i32, i32, i32, i32
  }
  func.func @transform_2(%arg0: i32) -> (i32, i32, i32, i32) {
    %c0_i32 = arith.constant 0 : i32
    %c0_i32_0 = arith.constant 0 : i32
    %c0_i32_1 = arith.constant 0 : i32
    %c0_i32_2 = arith.constant 0 : i32
    return %arg0, %c0_i32, %c0_i32_0, %c0_i32_1 : i32, i32, i32, i32
  }
  func.func @transform_3(%arg0: i32) -> (i32, i32, i32, i32) {
    %c0_i32 = arith.constant 0 : i32
    %c0_i32_0 = arith.constant 0 : i32
    %c0_i32_1 = arith.constant 0 : i32
    %c0_i32_2 = arith.constant 0 : i32
    return %arg0, %c0_i32, %c0_i32_0, %c0_i32_1 : i32, i32, i32, i32
  }
  func.func @transform_4(%arg0: i32) -> (i32, i32, i32, i32) {
    %c0_i32 = arith.constant 0 : i32
    %c0_i32_0 = arith.constant 0 : i32
    %c0_i32_1 = arith.constant 0 : i32
    %c0_i32_2 = arith.constant 0 : i32
    return %arg0, %c0_i32, %c0_i32_0, %c0_i32_1 : i32, i32, i32, i32
  }
}

</mosaic_0001>

<llo_original>
// kernel: weighted_ssim.1
$region0: #{weighted_ssim.1}
  #allocation0 [shape = 'u32[]', space=smem, size = 0x4, offset = 0x4, fixed_abs, tag = 'smem constant byte address 0x4 - core index']
  #allocation1 [shape = 'u32[144,128]{1,0:T(1,128)}', space=vmem, size = 0x12000, scoped, tag = 'internal scratch']
  %s0 = inlined_call_operand.vmem [shape: f32[2,3,16,128], index: 0, kind: input, shape index: {}]
  %s1 = inlined_call_operand.vmem [shape: f32[2,3,16,128], index: 1, kind: input, shape index: {}]
  %s2 = inlined_call_operand.vmem [shape: f32[2,1,16,128], index: 2, kind: input, shape index: {}]
  %s3 = inlined_call_operand.hbm [shape: f32[2,3,16,128], index: 3, kind: output, shape index: {0}]
  %s4 = inlined_call_operand.hbm [shape: f32[2,1,16,128], index: 4, kind: output, shape index: {1}]
  %5 = xla_tuple %s3, %s4
  %s6 = sld [smem:[#allocation0]]
  $region53: #{weighted_ssim.1} parent=0
    _
  %s8 = ssub.s32 1, %s6
  %s9 = scalar_select 0, %s8, %s6
  $region1: #{weighted_ssim.1} parent=0
    #allocation2 [shape = 'u8[49152]{0}', space=vmem, size = 0xc000, scoped, tag = 'output window, operand 0']
    #allocation3 [shape = 's32[2]{0}', space=sflag, size = 0x8, scoped, tag = 'scoped memory for weighted_ssim.1']
    #allocation4 [shape = 'u8[16384]{0}', space=vmem, size = 0x4000, scoped, tag = 'output window, operand 1']
    #allocation5 [shape = 's32[2]{0}', space=sflag, size = 0x8, scoped, tag = 'scoped memory for weighted_ssim.1']
    %10 = vsyncpa [#allocation3], 0
    %s11 = scalar_lea.sflag [#allocation3], 1
    %12 = vsyncpa %s11, 0
    %13 = vsyncpa [#allocation5], 0
    %s14 = scalar_lea.sflag [#allocation5], 1
    %15 = vsyncpa %s14, 0
    loop: start=0, step=1, limit=4
    $region2: #{weighted_ssim.1} parent=1 // loop_pre_header
      _
    $region3: #{weighted_ssim.1} parent=1 // loop_header
      %s17 = sphi 0, %s21
      %p18 = scmp.ge.s32.totalorder %s17, 4
      %s27 = sphi 0, %s29
      %s30 = sphi 0, %s27
      %s31 = sphi 0, %s30
      %s47 = sphi 0, %s31
      %s53 = sphi 0, %s55
      %s56 = sphi 0, %s53
      %s57 = sphi 0, %s56
      %s73 = sphi 0, %s57
      %s79 = sphi 0, %s81
      %s82 = sphi 0, %s79
      %s83 = sphi 0, %s82
      %s99 = sphi 0, %s83
      %s105 = sphi 0, %s107
      %s108 = sphi 0, %s105
      %s109 = sphi 0, %s108
      %s125 = sphi 0, %s109
      %s131 = sphi 0, %s133
      %s134 = sphi 0, %s131
      %s135 = sphi 0, %s134
      %s151 = sphi 0, %s135
    $region4: #{weighted_ssim.1} parent=1 // loop_header_branch
      %20 = sbr.rel (%p18) target = $region8
    $region5: #{weighted_ssim.1} parent=1 // loop_body
      %s22 = ssub.s32 %s17, 1
      %s23 = ssub.s32 %s17, 2
      %s24 = sadd.s32 %s17, 1
      %s25 = ssub.s32 %s17, %s24
      %p26 = scmp.eq.s32.totalorder %s25, 0
      %s28 = sadd.s32 %s27, 1
      %s29 = scalar_select %p26, %s27, %s28
      %p32 = pneg %p26
      %p33 = scmp.eq.s32.totalorder %s17, 1
      %p34 = por %p32, %p33
      %p35 = scmp.ne.s32.totalorder %s27, %s30
      %p36 = scmp.eq.s32.totalorder %s17, 0
      %p37 = por %p35, %p36
      %p38 = scmp.ne.s32.totalorder %s27, %s30
      %p39 = scmp.eq.s32.totalorder %s22, 1
      %p40 = por %p38, %p39
      %p41 = scmp.ne.s32.totalorder %s30, %s31
      %p42 = scmp.eq.s32.totalorder %s22, 0
      %p43 = por %p41, %p42
      %p44 = scmp.ne.s32.totalorder %s30, %s31
      %p45 = scmp.eq.s32.totalorder %s23, 1
      %p46 = por %p44, %p45
      %p48 = scmp.ne.s32.totalorder %s31, %s47
      %p49 = scmp.eq.s32.totalorder %s23, 0
      %p50 = por %p48, %p49
      %s51 = ssub.s32 %s17, %s24
      %p52 = scmp.eq.s32.totalorder %s51, 0
      %s54 = sadd.s32 %s53, 1
      %s55 = scalar_select %p52, %s53, %s54
      %p58 = pneg %p52
      %p59 = scmp.eq.s32.totalorder %s17, 1
      %p60 = por %p58, %p59
      %p61 = scmp.ne.s32.totalorder %s53, %s56
      %p62 = scmp.eq.s32.totalorder %s17, 0
      %p63 = por %p61, %p62
      %p64 = scmp.ne.s32.totalorder %s53, %s56
      %p65 = scmp.eq.s32.totalorder %s22, 1
      %p66 = por %p64, %p65
      %p67 = scmp.ne.s32.totalorder %s56, %s57
      %p68 = scmp.eq.s32.totalorder %s22, 0
      %p69 = por %p67, %p68
      %p70 = scmp.ne.s32.totalorder %s56, %s57
      %p71 = scmp.eq.s32.totalorder %s23, 1
      %p72 = por %p70, %p71
      %p74 = scmp.ne.s32.totalorder %s57, %s73
      %p75 = scmp.eq.s32.totalorder %s23, 0
      %p76 = por %p74, %p75
      %s77 = ssub.s32 %s17, %s24
      %p78 = scmp.eq.s32.totalorder %s77, 0
      %s80 = sadd.s32 %s79, 1
      %s81 = scalar_select %p78, %s79, %s80
      %p84 = pneg %p78
      %p85 = scmp.eq.s32.totalorder %s17, 1
      %p86 = por %p84, %p85
      %p87 = scmp.ne.s32.totalorder %s79, %s82
      %p88 = scmp.eq.s32.totalorder %s17, 0
      %p89 = por %p87, %p88
      %p90 = scmp.ne.s32.totalorder %s79, %s82
      %p91 = scmp.eq.s32.totalorder %s22, 1
      %p92 = por %p90, %p91
      %p93 = scmp.ne.s32.totalorder %s82, %s83
      %p94 = scmp.eq.s32.totalorder %s22, 0
      %p95 = por %p93, %p94
      %p96 = scmp.ne.s32.totalorder %s82, %s83
      %p97 = scmp.eq.s32.totalorder %s23, 1
      %p98 = por %p96, %p97
      %p100 = scmp.ne.s32.totalorder %s83, %s99
      %p101 = scmp.eq.s32.totalorder %s23, 0
      %p102 = por %p100, %p101
      %s103 = ssub.s32 %s17, %s24
      %p104 = scmp.eq.s32.totalorder %s103, 0
      %s106 = sadd.s32 %s105, 1
      %s107 = scalar_select %p104, %s105, %s106
      %p110 = pneg %p104
      %p111 = scmp.eq.s32.totalorder %s17, 1
      %p112 = por %p110, %p111
      %p113 = scmp.ne.s32.totalorder %s105, %s108
      %p114 = scmp.eq.s32.totalorder %s17, 0
      %p115 = por %p113, %p114
      %p116 = scmp.ne.s32.totalorder %s105, %s108
      %p117 = scmp.eq.s32.totalorder %s22, 1
      %p118 = por %p116, %p117
      %p119 = scmp.ne.s32.totalorder %s108, %s109
      %p120 = scmp.eq.s32.totalorder %s22, 0
      %p121 = por %p119, %p120
      %p122 = scmp.ne.s32.totalorder %s108, %s109
      %p123 = scmp.eq.s32.totalorder %s23, 1
      %p124 = por %p122, %p123
      %p126 = scmp.ne.s32.totalorder %s109, %s125
      %p127 = scmp.eq.s32.totalorder %s23, 0
      %p128 = por %p126, %p127
      %s129 = ssub.s32 %s17, %s24
      %p130 = scmp.eq.s32.totalorder %s129, 0
      %s132 = sadd.s32 %s131, 1
      %s133 = scalar_select %p130, %s131, %s132
      %p136 = pneg %p130
      %p137 = scmp.eq.s32.totalorder %s17, 1
      %p138 = por %p136, %p137
      %p139 = scmp.ne.s32.totalorder %s131, %s134
      %p140 = scmp.eq.s32.totalorder %s17, 0
      %p141 = por %p139, %p140
      %p142 = scmp.ne.s32.totalorder %s131, %s134
      %p143 = scmp.eq.s32.totalorder %s22, 1
      %p144 = por %p142, %p143
      %p145 = scmp.ne.s32.totalorder %s134, %s135
      %p146 = scmp.eq.s32.totalorder %s22, 0
      %p147 = por %p145, %p146
      %p148 = scmp.ne.s32.totalorder %s134, %s135
      %p149 = scmp.eq.s32.totalorder %s23, 1
      %p150 = por %p148, %p149
      %p152 = scmp.ne.s32.totalorder %s135, %s151
      %p153 = scmp.eq.s32.totalorder %s23, 0
      %p154 = por %p152, %p153
      %p155 = scmp.le.s32.totalorder 1, %s17
      %p156 = scmp.lt.s32.totalorder %s17, 3
      %p157 = pnand %p155, %p156
      %p158 = pneg %p157
      // Predicated region
      $region9: #{weighted_ssim.1} parent=5 // pred_check
        _
      $region10: #{weighted_ssim.1} parent=5 // pred_check_branch
        %160 = sbr.rel (%p157) target = $region12
      $region11: #{weighted_ssim.1} parent=5 // pred_region
        %s161 = ssub.s32 %s17, 1
      $region12: #{weighted_ssim.1} parent=5 // pred_fallthru
        _
      %p162 = scmp.lt.s32.totalorder %s17, 2
      // Predicated region
      $region13: #{weighted_ssim.1} parent=5 // pred_check
        %p163 = pneg %p162
      $region14: #{weighted_ssim.1} parent=5 // pred_check_branch
        %165 = sbr.rel (%p163) target = $region16
      $region15: #{weighted_ssim.1} parent=5 // pred_region
        // Predicated region
        $region17: #{weighted_ssim.1} parent=15 // pred_check
          %p166 = pneg %p37
        $region18: #{weighted_ssim.1} parent=15 // pred_check_branch
          %168 = sbr.rel (%p166) target = $region20
        $region19: #{weighted_ssim.1} parent=15 // pred_region
          %p169 = scmp.lt.s32.totalorder %s17, 1
          %s170 = scalar_select %p169, %s17, 1
          %s171 = smul.addr %s170, 6
          %s172 = smul.addr %s171, 8
          %s173 = scalar_lea.vmem %s0, %s172
        $region20: #{weighted_ssim.1} parent=15 // pred_fallthru
          _
        // Predicated region
        $region21: #{weighted_ssim.1} parent=15 // pred_check
          %p174 = pneg %p63
        $region22: #{weighted_ssim.1} parent=15 // pred_check_branch
          %176 = sbr.rel (%p174) target = $region24
        $region23: #{weighted_ssim.1} parent=15 // pred_region
          %p177 = scmp.lt.s32.totalorder %s17, 1
          %s178 = scalar_select %p177, %s17, 1
          %s179 = smul.addr %s178, 6
          %s180 = smul.addr %s179, 8
          %s181 = scalar_lea.vmem %s1, %s180
        $region24: #{weighted_ssim.1} parent=15 // pred_fallthru
          _
        // Predicated region
        $region25: #{weighted_ssim.1} parent=15 // pred_check
          %p182 = pneg %p89
        $region26: #{weighted_ssim.1} parent=15 // pred_check_branch
          %184 = sbr.rel (%p182) target = $region28
        $region27: #{weighted_ssim.1} parent=15 // pred_region
          %p185 = scmp.lt.s32.totalorder %s17, 1
          %s186 = scalar_select %p185, %s17, 1
          %s187 = smul.addr %s186, 2
          %s188 = smul.addr %s187, 8
          %s189 = scalar_lea.vmem %s2, %s188
        $region28: #{weighted_ssim.1} parent=15 // pred_fallthru
          _
      $region16: #{weighted_ssim.1} parent=5 // pred_fallthru
        _
      %p190 = scmp.le.s32.totalorder 1, %s17
      %p191 = scmp.lt.s32.totalorder %s17, 3
      %p192 = pnand %p190, %p191
      %p193 = pneg %p192
      // Predicated region
      $region29: #{weighted_ssim.1} parent=5 // pred_check
        _
      $region30: #{weighted_ssim.1} parent=5 // pred_check_branch
        %195 = sbr.rel (%p192) target = $region32
      $region31: #{weighted_ssim.1} parent=5 // pred_region
        %s196 = ssub.s32 %s17, 1
        %p197 = scmp.lt.s32.totalorder %s22, 1
        %s198 = scalar_select %p197, %s22, 1
        %s199 = smul.addr %s198, 6
        %s200 = smul.addr %s199, 8
        %s201 = scalar_lea.vmem %s0, %s200
        %p202 = pneg %p43
        %p203 = pneg %p40
        %p204 = scmp.lt.s32.totalorder %s22, 1
        %s205 = scalar_select %p204, %s22, 1
        %s206 = smul.addr %s205, 6
        %s207 = smul.addr %s206, 8
        %s208 = scalar_lea.vmem %s1, %s207
        %p209 = pneg %p69
        %p210 = pneg %p66
        %p211 = scmp.lt.s32.totalorder %s22, 1
        %s212 = scalar_select %p211, %s22, 1
        %s213 = smul.addr %s212, 2
        %s214 = smul.addr %s213, 8
        %s215 = scalar_lea.vmem %s2, %s214
        %p216 = pneg %p95
        %p217 = pneg %p92
        %p218 = pneg %p121
        %p219 = pneg %p118
        %s220 = sand.u32 %s108, 1
        %s221 = scalar_lea.sflag [#allocation3], %s220
        %s222 = sand.u32 %s108, 1
        %s223 = smul.addr %s222, 48
        %s224 = scalar_lea.vmem [#allocation2], %s223
        %p225 = pneg %p147
        %p226 = pneg %p144
        %s227 = sand.u32 %s134, 1
        %s228 = scalar_lea.sflag [#allocation5], %s227
        %s229 = sand.u32 %s134, 1
        %s230 = smul.addr %s229, 16
        %s231 = scalar_lea.vmem [#allocation4], %s230
        %p232 = scmp.lt.s32.totalorder %s22, 1
        %s233 = scalar_select %p232, %s22, 1
        %s234 = smul.addr %s233, 6
        %s235 = smul.addr %s234, 8
        %s236 = scalar_lea.vmem %s0, %s235
        %p237 = scmp.lt.s32.totalorder %s22, 1
        %s238 = scalar_select %p237, %s22, 1
        %s239 = smul.addr %s238, 6
        %s240 = smul.addr %s239, 8
        %s241 = scalar_lea.vmem %s1, %s240
        %p242 = scmp.lt.s32.totalorder %s22, 1
        %s243 = scalar_select %p242, %s22, 1
        %s244 = smul.addr %s243, 2
        %s245 = smul.addr %s244, 8
        %s246 = scalar_lea.vmem %s2, %s245
        %v247 = vld [vmem:[%s236] sm:$0xff]
        %v248 = vld [vmem:[%s236 + $0x8] sm:$0xff]
        %v249 = vld [vmem:[%s236 + $0x10] sm:$0xff]
        %v250 = vld [vmem:[%s236 + $0x18] sm:$0xff]
        %v251 = vld [vmem:[%s236 + $0x20] sm:$0xff]
        %v252 = vld [vmem:[%s236 + $0x28] sm:$0xff]
        %v253 = vld [vmem:[%s241] sm:$0xff]
        %v254 = vld [vmem:[%s241 + $0x8] sm:$0xff]
        %v255 = vld [vmem:[%s241 + $0x10] sm:$0xff]
        %v256 = vld [vmem:[%s241 + $0x18] sm:$0xff]
        %v257 = vld [vmem:[%s241 + $0x20] sm:$0xff]
        %v258 = vld [vmem:[%s241 + $0x28] sm:$0xff]
        %v259 = vld [vmem:[%s246] sm:$0xff]
        %v260 = vld [vmem:[%s246 + $0x8] sm:$0xff]
        %v261 = vlaneseq
        %v262 = vand.u32 %v261, 127
        %vm263 = vcmp.eq.s32.totalorder %v262, 15
        %vm266 = vcmask 1040384
        %v267 = vrot.slane %v259, 7
        %v268 = vrot.slane %v260, 7
        %v269 = vsel %vm266, %v267, %v268
        %v272 = vsel %vm266, 0.0, %v267
        %vm273 = vcmask 1046528
        %v274 = vrot.slane %v259, 1
        %v275 = vrot.slane %v260, 1
        %v276 = vsel %vm273, %v274, %v275
        %v279 = vsel %vm273, %v275, 0.0
        %v280 = vadd.f32 %v259, %v272
        %v281 = vadd.f32 %v260, %v269
        %v282 = vadd.f32 %v280, %v276
        %v283 = vadd.f32 %v281, %v279
        %286 = vrot.lane.b32.xlu0 %v282, 1
        %v287 = vpop.permute.xlu0 %286
        %288 = vrot.lane.b32.xlu0 %v283, 1
        %v289 = vpop.permute.xlu0 %288
        %vm292 = vcmask 7168
        %v293 = vsel %vm292, 0.0, %v287
        %v294 = vsel %vm292, 0.0, %v289
        %295 = vrot.lane.b32.xlu0 %v282, 127
        %v296 = vpop.permute.xlu0 %295
        %297 = vrot.lane.b32.xlu0 %v283, 127
        %v298 = vpop.permute.xlu0 %297
        %vm301 = vcmask 1039360
        %v302 = vsel %vm301, %v296, 0.0
        %v303 = vsel %vm301, %v298, 0.0
        %v304 = vadd.f32 %v282, %v293
        %v305 = vadd.f32 %v283, %v294
        %v306 = vadd.f32 %v304, %v302
        %v307 = vadd.f32 %v305, %v303
        %v308 = vmul.f32 %v306, 0.11111111
        %v309 = vmul.f32 %v307, 0.11111111
        %310 = vst [vmem:[%s231] sm:$0xff] %v308
        %311 = vst [vmem:[%s231 + $0x8] sm:$0xff] %v309
        %v312 = vadd.f32 %v308, 0.01
        %v313 = vadd.f32 %v309, 0.01
        %v314 = vrcp.pop %v312
        %v315 = vrcp.pop %v313
        %v316 = vmul.f32 %v312, %v314
        %v317 = vmul.f32 %v313, %v315
        %v318 = vsub.f32 2.0, %v316
        %v319 = vsub.f32 2.0, %v317
        %v320 = vmul.f32 %v314, %v318
        %v321 = vmul.f32 %v315, %v319
        %v322 = vmul.f32 %v312, %v320
        %v323 = vmul.f32 %v313, %v321
        %v324 = vsub.f32 2.0, %v322
        %v325 = vsub.f32 2.0, %v323
        %v326 = vmul.f32 %v320, %v324
        %v327 = vmul.f32 %v321, %v325
        %v328 = vmul.f32 %v326, 0.11111111
        %v329 = vmul.f32 %v327, 0.11111111
        %v330 = vadd.f32 %v259, 0.01
        %v331 = vadd.f32 %v260, 0.01
        %v332 = vmul.f32 %v247, %v330
        %v333 = vmul.f32 %v248, %v331
        %v334 = vmul.f32 %v249, %v330
        %v335 = vmul.f32 %v250, %v331
        %v336 = vmul.f32 %v251, %v330
        %v337 = vmul.f32 %v252, %v331
        %v341 = vrot.slane %v332, 1
        %v342 = vrot.slane %v334, 1
        %v343 = vrot.slane %v336, 1
        %v350 = vrot.slane %v332, 7
        %v351 = vrot.slane %v333, 7
        %v352 = vsel %vm266, %v350, %v351
        %v353 = vrot.slane %v334, 7
        %v354 = vrot.slane %v335, 7
        %v355 = vsel %vm266, %v353, %v354
        %v356 = vrot.slane %v336, 7
        %v357 = vrot.slane %v337, 7
        %v358 = vsel %vm266, %v356, %v357
        %v365 = vsel %vm266, %v341, %v350
        %v366 = vsel %vm266, %v342, %v353
        %v367 = vsel %vm266, %v343, %v356
        %v368 = vrot.slane %v333, 1
        %v369 = vsel %vm273, %v341, %v368
        %v370 = vrot.slane %v335, 1
        %v371 = vsel %vm273, %v342, %v370
        %v372 = vrot.slane %v337, 1
        %v373 = vsel %vm273, %v343, %v372
        %v383 = vsel %vm273, %v368, %v351
        %v384 = vsel %vm273, %v370, %v354
        %v385 = vsel %vm273, %v372, %v357
        %v386 = vadd.f32 %v332, %v365
        %v387 = vadd.f32 %v333, %v352
        %v388 = vadd.f32 %v334, %v366
        %v389 = vadd.f32 %v335, %v355
        %v390 = vadd.f32 %v336, %v367
        %v391 = vadd.f32 %v337, %v358
        %v392 = vadd.f32 %v386, %v369
        %v393 = vadd.f32 %v387, %v383
        %v394 = vadd.f32 %v388, %v371
        %v395 = vadd.f32 %v389, %v384
        %v396 = vadd.f32 %v390, %v373
        %v397 = vadd.f32 %v391, %v385
        %404 = vrot.lane.b32.xlu0 %v392, 127
        %v405 = vpop.permute.xlu0 %404
        %406 = vrot.lane.b32.xlu0 %v393, 127
        %v407 = vpop.permute.xlu0 %406
        %408 = vrot.lane.b32.xlu0 %v394, 127
        %v409 = vpop.permute.xlu0 %408
        %410 = vrot.lane.b32.xlu0 %v395, 127
        %v411 = vpop.permute.xlu0 %410
        %412 = vrot.lane.b32.xlu0 %v396, 127
        %v413 = vpop.permute.xlu0 %412
        %414 = vrot.lane.b32.xlu0 %v397, 127
        %v415 = vpop.permute.xlu0 %414
        %422 = vrot.lane.b32.xlu0 %v392, 1
        %v423 = vpop.permute.xlu0 %422
        %424 = vrot.lane.b32.xlu0 %v393, 1
        %v425 = vpop.permute.xlu0 %424
        %426 = vrot.lane.b32.xlu0 %v394, 1
        %v427 = vpop.permute.xlu0 %426
        %428 = vrot.lane.b32.xlu0 %v395, 1
        %v429 = vpop.permute.xlu0 %428
        %430 = vrot.lane.b32.xlu0 %v396, 1
        %v431 = vpop.permute.xlu0 %430
        %432 = vrot.lane.b32.xlu0 %v397, 1
        %v433 = vpop.permute.xlu0 %432
        %v440 = vsel %vm292, %v405, %v423
        %v441 = vsel %vm292, %v407, %v425
        %v442 = vsel %vm292, %v409, %v427
        %v443 = vsel %vm292, %v411, %v429
        %v444 = vsel %vm292, %v413, %v431
        %v445 = vsel %vm292, %v415, %v433
        %v446 = vsel %vm263, 1, 0
        %vm447 = vcmp.eq.s32.totalorder %v446, 1
        %448 = vset.pattern.permute.xlu0 14
        %449 = vperm.xlu0 %448, %v392
        %v450 = vpop.permute.xlu0 %449
        %452 = vset.pattern.permute.xlu0 14
        %453 = vperm.xlu0 %452, %v393
        %v454 = vpop.permute.xlu0 %453
        %456 = vset.pattern.permute.xlu0 14
        %457 = vperm.xlu0 %456, %v394
        %v458 = vpop.permute.xlu0 %457
        %460 = vset.pattern.permute.xlu0 14
        %461 = vperm.xlu0 %460, %v395
        %v462 = vpop.permute.xlu0 %461
        %464 = vset.pattern.permute.xlu0 14
        %465 = vperm.xlu0 %464, %v396
        %v466 = vpop.permute.xlu0 %465
        %468 = vset.pattern.permute.xlu0 14
        %469 = vperm.xlu0 %468, %v397
        %v470 = vpop.permute.xlu0 %469
        %v472 = vsel %vm447, %v450, %v405
        %v473 = vsel %vm447, %v454, %v407
        %v474 = vsel %vm447, %v458, %v409
        %v475 = vsel %vm447, %v462, %v411
        %v476 = vsel %vm447, %v466, %v413
        %v477 = vsel %vm447, %v470, %v415
        %v478 = vadd.f32 %v392, %v440
        %v479 = vadd.f32 %v393, %v441
        %v480 = vadd.f32 %v394, %v442
        %v481 = vadd.f32 %v395, %v443
        %v482 = vadd.f32 %v396, %v444
        %v483 = vadd.f32 %v397, %v445
        %v484 = vadd.f32 %v478, %v472
        %v485 = vadd.f32 %v479, %v473
        %v486 = vadd.f32 %v480, %v474
        %v487 = vadd.f32 %v481, %v475
        %v488 = vadd.f32 %v482, %v476
        %v489 = vadd.f32 %v483, %v477
        %v490 = vmul.f32 %v484, %v328
        %v491 = vmul.f32 %v485, %v329
        %v492 = vmul.f32 %v486, %v328
        %v493 = vmul.f32 %v487, %v329
        %v494 = vmul.f32 %v488, %v328
        %v495 = vmul.f32 %v489, %v329
        %v496 = vmul.f32 %v247, %v332
        %v497 = vmul.f32 %v248, %v333
        %v498 = vmul.f32 %v249, %v334
        %v499 = vmul.f32 %v250, %v335
        %v500 = vmul.f32 %v251, %v336
        %v501 = vmul.f32 %v252, %v337
        %v505 = vrot.slane %v496, 1
        %v506 = vrot.slane %v498, 1
        %v507 = vrot.slane %v500, 1
        %v514 = vrot.slane %v496, 7
        %v515 = vrot.slane %v497, 7
        %v516 = vsel %vm266, %v514, %v515
        %v517 = vrot.slane %v498, 7
        %v518 = vrot.slane %v499, 7
        %v519 = vsel %vm266, %v517, %v518
        %v520 = vrot.slane %v500, 7
        %v521 = vrot.slane %v501, 7
        %v522 = vsel %vm266, %v520, %v521
        %v529 = vsel %vm266, %v505, %v514
        %v530 = vsel %vm266, %v506, %v517
        %v531 = vsel %vm266, %v507, %v520
        %v532 = vrot.slane %v497, 1
        %v533 = vsel %vm273, %v505, %v532
        %v534 = vrot.slane %v499, 1
        %v535 = vsel %vm273, %v506, %v534
        %v536 = vrot.slane %v501, 1
        %v537 = vsel %vm273, %v507, %v536
        %v547 = vsel %vm273, %v532, %v515
        %v548 = vsel %vm273, %v534, %v518
        %v549 = vsel %vm273, %v536, %v521
        %v550 = vadd.f32 %v496, %v529
        %v551 = vadd.f32 %v497, %v516
        %v552 = vadd.f32 %v498, %v530
        %v553 = vadd.f32 %v499, %v519
        %v554 = vadd.f32 %v500, %v531
        %v555 = vadd.f32 %v501, %v522
        %v556 = vadd.f32 %v550, %v533
        %v557 = vadd.f32 %v551, %v547
        %v558 = vadd.f32 %v552, %v535
        %v559 = vadd.f32 %v553, %v548
        %v560 = vadd.f32 %v554, %v537
        %v561 = vadd.f32 %v555, %v549
        %568 = vrot.lane.b32.xlu0 %v556, 127
        %v569 = vpop.permute.xlu0 %568
        %570 = vrot.lane.b32.xlu0 %v557, 127
        %v571 = vpop.permute.xlu0 %570
        %572 = vrot.lane.b32.xlu0 %v558, 127
        %v573 = vpop.permute.xlu0 %572
        %574 = vrot.lane.b32.xlu0 %v559, 127
        %v575 = vpop.permute.xlu0 %574
        %576 = vrot.lane.b32.xlu0 %v560, 127
        %v577 = vpop.permute.xlu0 %576
        %578 = vrot.lane.b32.xlu0 %v561, 127
        %v579 = vpop.permute.xlu0 %578
        %586 = vrot.lane.b32.xlu0 %v556, 1
        %v587 = vpop.permute.xlu0 %586
        %588 = vrot.lane.b32.xlu0 %v557, 1
        %v589 = vpop.permute.xlu0 %588
        %590 = vrot.lane.b32.xlu0 %v558, 1
        %v591 = vpop.permute.xlu0 %590
        %592 = vrot.lane.b32.xlu0 %v559, 1
        %v593 = vpop.permute.xlu0 %592
        %594 = vrot.lane.b32.xlu0 %v560, 1
        %v595 = vpop.permute.xlu0 %594
        %596 = vrot.lane.b32.xlu0 %v561, 1
        %v597 = vpop.permute.xlu0 %596
        %v604 = vsel %vm292, %v569, %v587
        %v605 = vsel %vm292, %v571, %v589
        %v606 = vsel %vm292, %v573, %v591
        %v607 = vsel %vm292, %v575, %v593
        %v608 = vsel %vm292, %v577, %v595
        %v609 = vsel %vm292, %v579, %v597
        %610 = vset.pattern.permute.xlu0 14
        %611 = vperm.xlu0 %610, %v556
        %v612 = vpop.permute.xlu0 %611
        %614 = vset.pattern.permute.xlu0 14
        %615 = vperm.xlu0 %614, %v557
        %v616 = vpop.permute.xlu0 %615
        %618 = vset.pattern.permute.xlu0 14
        %619 = vperm.xlu0 %618, %v558
        %v620 = vpop.permute.xlu0 %619
        %622 = vset.pattern.permute.xlu0 14
        %623 = vperm.xlu0 %622, %v559
        %v624 = vpop.permute.xlu0 %623
        %626 = vset.pattern.permute.xlu0 14
        %627 = vperm.xlu0 %626, %v560
        %v628 = vpop.permute.xlu0 %627
        %630 = vset.pattern.permute.xlu0 14
        %631 = vperm.xlu0 %630, %v561
        %v632 = vpop.permute.xlu0 %631
        %v634 = vsel %vm447, %v612, %v569
        %v635 = vsel %vm447, %v616, %v571
        %v636 = vsel %vm447, %v620, %v573
        %v637 = vsel %vm447, %v624, %v575
        %v638 = vsel %vm447, %v628, %v577
        %v639 = vsel %vm447, %v632, %v579
        %v640 = vadd.f32 %v556, %v604
        %v641 = vadd.f32 %v557, %v605
        %v642 = vadd.f32 %v558, %v606
        %v643 = vadd.f32 %v559, %v607
        %v644 = vadd.f32 %v560, %v608
        %v645 = vadd.f32 %v561, %v609
        %v646 = vadd.f32 %v640, %v634
        %v647 = vadd.f32 %v641, %v635
        %v648 = vadd.f32 %v642, %v636
        %v649 = vadd.f32 %v643, %v637
        %v650 = vadd.f32 %v644, %v638
        %v651 = vadd.f32 %v645, %v639
        %v652 = vmul.f32 %v646, %v328
        %v653 = vmul.f32 %v647, %v329
        %v654 = vmul.f32 %v648, %v328
        %v655 = vmul.f32 %v649, %v329
        %v656 = vmul.f32 %v650, %v328
        %v657 = vmul.f32 %v651, %v329
        %v658 = vmul.f32 %v490, %v490
        %v659 = vmul.f32 %v491, %v491
        %v660 = vmul.f32 %v492, %v492
        %v661 = vmul.f32 %v493, %v493
        %v662 = vmul.f32 %v494, %v494
        %v663 = vmul.f32 %v495, %v495
        %v664 = vsub.f32 %v652, %v658
        %v665 = vsub.f32 %v653, %v659
        %v666 = vsub.f32 %v654, %v660
        %v667 = vsub.f32 %v655, %v661
        %v668 = vsub.f32 %v656, %v662
        %v669 = vsub.f32 %v657, %v663
        %v670 = vmul.f32 %v253, %v330
        %v671 = vmul.f32 %v254, %v331
        %v672 = vmul.f32 %v255, %v330
        %v673 = vmul.f32 %v256, %v331
        %v674 = vmul.f32 %v257, %v330
        %v675 = vmul.f32 %v258, %v331
        %v679 = vrot.slane %v670, 1
        %v680 = vrot.slane %v672, 1
        %v681 = vrot.slane %v674, 1
        %v688 = vrot.slane %v670, 7
        %v689 = vrot.slane %v671, 7
        %v690 = vsel %vm266, %v688, %v689
        %v691 = vrot.slane %v672, 7
        %v692 = vrot.slane %v673, 7
        %v693 = vsel %vm266, %v691, %v692
        %v694 = vrot.slane %v674, 7
        %v695 = vrot.slane %v675, 7
        %v696 = vsel %vm266, %v694, %v695
        %v703 = vsel %vm266, %v679, %v688
        %v704 = vsel %vm266, %v680, %v691
        %v705 = vsel %vm266, %v681, %v694
        %v706 = vrot.slane %v671, 1
        %v707 = vsel %vm273, %v679, %v706
        %v708 = vrot.slane %v673, 1
        %v709 = vsel %vm273, %v680, %v708
        %v710 = vrot.slane %v675, 1
        %v711 = vsel %vm273, %v681, %v710
        %v721 = vsel %vm273, %v706, %v689
        %v722 = vsel %vm273, %v708, %v692
        %v723 = vsel %vm273, %v710, %v695
        %v724 = vadd.f32 %v670, %v703
        %v725 = vadd.f32 %v671, %v690
        %v726 = vadd.f32 %v672, %v704
        %v727 = vadd.f32 %v673, %v693
        %v728 = vadd.f32 %v674, %v705
        %v729 = vadd.f32 %v675, %v696
        %v730 = vadd.f32 %v724, %v707
        %v731 = vadd.f32 %v725, %v721
        %v732 = vadd.f32 %v726, %v709
        %v733 = vadd.f32 %v727, %v722
        %v734 = vadd.f32 %v728, %v711
        %v735 = vadd.f32 %v729, %v723
        %742 = vrot.lane.b32.xlu0 %v730, 127
        %v743 = vpop.permute.xlu0 %742
        %744 = vrot.lane.b32.xlu0 %v731, 127
        %v745 = vpop.permute.xlu0 %744
        %746 = vrot.lane.b32.xlu0 %v732, 127
        %v747 = vpop.permute.xlu0 %746
        %748 = vrot.lane.b32.xlu0 %v733, 127
        %v749 = vpop.permute.xlu0 %748
        %750 = vrot.lane.b32.xlu0 %v734, 127
        %v751 = vpop.permute.xlu0 %750
        %752 = vrot.lane.b32.xlu0 %v735, 127
        %v753 = vpop.permute.xlu0 %752
        %760 = vrot.lane.b32.xlu0 %v730, 1
        %v761 = vpop.permute.xlu0 %760
        %762 = vrot.lane.b32.xlu0 %v731, 1
        %v763 = vpop.permute.xlu0 %762
        %764 = vrot.lane.b32.xlu0 %v732, 1
        %v765 = vpop.permute.xlu0 %764
        %766 = vrot.lane.b32.xlu0 %v733, 1
        %v767 = vpop.permute.xlu0 %766
        %768 = vrot.lane.b32.xlu0 %v734, 1
        %v769 = vpop.permute.xlu0 %768
        %770 = vrot.lane.b32.xlu0 %v735, 1
        %v771 = vpop.permute.xlu0 %770
        %v778 = vsel %vm292, %v743, %v761
        %v779 = vsel %vm292, %v745, %v763
        %v780 = vsel %vm292, %v747, %v765
        %v781 = vsel %vm292, %v749, %v767
        %v782 = vsel %vm292, %v751, %v769
        %v783 = vsel %vm292, %v753, %v771
        %784 = vset.pattern.permute.xlu0 14
        %785 = vperm.xlu0 %784, %v730
        %v786 = vpop.permute.xlu0 %785
        %788 = vset.pattern.permute.xlu0 14
        %789 = vperm.xlu0 %788, %v731
        %v790 = vpop.permute.xlu0 %789
        %792 = vset.pattern.permute.xlu0 14
        %793 = vperm.xlu0 %792, %v732
        %v794 = vpop.permute.xlu0 %793
        %796 = vset.pattern.permute.xlu0 14
        %797 = vperm.xlu0 %796, %v733
        %v798 = vpop.permute.xlu0 %797
        %800 = vset.pattern.permute.xlu0 14
        %801 = vperm.xlu0 %800, %v734
        %v802 = vpop.permute.xlu0 %801
        %804 = vset.pattern.permute.xlu0 14
        %805 = vperm.xlu0 %804, %v735
        %v806 = vpop.permute.xlu0 %805
        %v808 = vsel %vm447, %v786, %v743
        %v809 = vsel %vm447, %v790, %v745
        %v810 = vsel %vm447, %v794, %v747
        %v811 = vsel %vm447, %v798, %v749
        %v812 = vsel %vm447, %v802, %v751
        %v813 = vsel %vm447, %v806, %v753
        %v814 = vadd.f32 %v730, %v778
        %v815 = vadd.f32 %v731, %v779
        %v816 = vadd.f32 %v732, %v780
        %v817 = vadd.f32 %v733, %v781
        %v818 = vadd.f32 %v734, %v782
        %v819 = vadd.f32 %v735, %v783
        %v820 = vadd.f32 %v814, %v808
        %v821 = vadd.f32 %v815, %v809
        %v822 = vadd.f32 %v816, %v810
        %v823 = vadd.f32 %v817, %v811
        %v824 = vadd.f32 %v818, %v812
        %v825 = vadd.f32 %v819, %v813
        %v826 = vmul.f32 %v820, %v328
        %v827 = vmul.f32 %v821, %v329
        %v828 = vmul.f32 %v822, %v328
        %v829 = vmul.f32 %v823, %v329
        %v830 = vmul.f32 %v824, %v328
        %v831 = vmul.f32 %v825, %v329
        %v832 = vmul.f32 %v253, %v670
        %v833 = vmul.f32 %v254, %v671
        %v834 = vmul.f32 %v255, %v672
        %v835 = vmul.f32 %v256, %v673
        %v836 = vmul.f32 %v257, %v674
        %v837 = vmul.f32 %v258, %v675
        %v841 = vrot.slane %v832, 1
        %v842 = vrot.slane %v834, 1
        %v843 = vrot.slane %v836, 1
        %v850 = vrot.slane %v832, 7
        %v851 = vrot.slane %v833, 7
        %v852 = vsel %vm266, %v850, %v851
        %v853 = vrot.slane %v834, 7
        %v854 = vrot.slane %v835, 7
        %v855 = vsel %vm266, %v853, %v854
        %v856 = vrot.slane %v836, 7
        %v857 = vrot.slane %v837, 7
        %v858 = vsel %vm266, %v856, %v857
        %v865 = vsel %vm266, %v841, %v850
        %v866 = vsel %vm266, %v842, %v853
        %v867 = vsel %vm266, %v843, %v856
        %v868 = vrot.slane %v833, 1
        %v869 = vsel %vm273, %v841, %v868
        %v870 = vrot.slane %v835, 1
        %v871 = vsel %vm273, %v842, %v870
        %v872 = vrot.slane %v837, 1
        %v873 = vsel %vm273, %v843, %v872
        %v883 = vsel %vm273, %v868, %v851
        %v884 = vsel %vm273, %v870, %v854
        %v885 = vsel %vm273, %v872, %v857
        %v886 = vadd.f32 %v832, %v865
        %v887 = vadd.f32 %v833, %v852
        %v888 = vadd.f32 %v834, %v866
        %v889 = vadd.f32 %v835, %v855
        %v890 = vadd.f32 %v836, %v867
        %v891 = vadd.f32 %v837, %v858
        %v892 = vadd.f32 %v886, %v869
        %v893 = vadd.f32 %v887, %v883
        %v894 = vadd.f32 %v888, %v871
        %v895 = vadd.f32 %v889, %v884
        %v896 = vadd.f32 %v890, %v873
        %v897 = vadd.f32 %v891, %v885
        %904 = vrot.lane.b32.xlu0 %v892, 127
        %v905 = vpop.permute.xlu0 %904
        %906 = vrot.lane.b32.xlu0 %v893, 127
        %v907 = vpop.permute.xlu0 %906
        %908 = vrot.lane.b32.xlu0 %v894, 127
        %v909 = vpop.permute.xlu0 %908
        %910 = vrot.lane.b32.xlu0 %v895, 127
        %v911 = vpop.permute.xlu0 %910
        %912 = vrot.lane.b32.xlu0 %v896, 127
        %v913 = vpop.permute.xlu0 %912
        %914 = vrot.lane.b32.xlu0 %v897, 127
        %v915 = vpop.permute.xlu0 %914
        %922 = vrot.lane.b32.xlu0 %v892, 1
        %v923 = vpop.permute.xlu0 %922
        %924 = vrot.lane.b32.xlu0 %v893, 1
        %v925 = vpop.permute.xlu0 %924
        %926 = vrot.lane.b32.xlu0 %v894, 1
        %v927 = vpop.permute.xlu0 %926
        %928 = vrot.lane.b32.xlu0 %v895, 1
        %v929 = vpop.permute.xlu0 %928
        %930 = vrot.lane.b32.xlu0 %v896, 1
        %v931 = vpop.permute.xlu0 %930
        %932 = vrot.lane.b32.xlu0 %v897, 1
        %v933 = vpop.permute.xlu0 %932
        %v940 = vsel %vm292, %v905, %v923
        %v941 = vsel %vm292, %v907, %v925
        %v942 = vsel %vm292, %v909, %v927
        %v943 = vsel %vm292, %v911, %v929
        %v944 = vsel %vm292, %v913, %v931
        %v945 = vsel %vm292, %v915, %v933
        %946 = vset.pattern.permute.xlu0 14
        %947 = vperm.xlu0 %946, %v892
        %v948 = vpop.permute.xlu0 %947
        %950 = vset.pattern.permute.xlu0 14
        %951 = vperm.xlu0 %950, %v893
        %v952 = vpop.permute.xlu0 %951
        %954 = vset.pattern.permute.xlu0 14
        %955 = vperm.xlu0 %954, %v894
        %v956 = vpop.permute.xlu0 %955
        %958 = vset.pattern.permute.xlu0 14
        %959 = vperm.xlu0 %958, %v895
        %v960 = vpop.permute.xlu0 %959
        %962 = vset.pattern.permute.xlu0 14
        %963 = vperm.xlu0 %962, %v896
        %v964 = vpop.permute.xlu0 %963
        %966 = vset.pattern.permute.xlu0 14
        %967 = vperm.xlu0 %966, %v897
        %v968 = vpop.permute.xlu0 %967
        %v970 = vsel %vm447, %v948, %v905
        %v971 = vsel %vm447, %v952, %v907
        %v972 = vsel %vm447, %v956, %v909
        %v973 = vsel %vm447, %v960, %v911
        %v974 = vsel %vm447, %v964, %v913
        %v975 = vsel %vm447, %v968, %v915
        %v976 = vadd.f32 %v892, %v940
        %v977 = vadd.f32 %v893, %v941
        %v978 = vadd.f32 %v894, %v942
        %v979 = vadd.f32 %v895, %v943
        %v980 = vadd.f32 %v896, %v944
        %v981 = vadd.f32 %v897, %v945
        %v982 = vadd.f32 %v976, %v970
        %v983 = vadd.f32 %v977, %v971
        %v984 = vadd.f32 %v978, %v972
        %v985 = vadd.f32 %v979, %v973
        %v986 = vadd.f32 %v980, %v974
        %v987 = vadd.f32 %v981, %v975
        %v988 = vmul.f32 %v982, %v328
        %v989 = vmul.f32 %v983, %v329
        %v990 = vmul.f32 %v984, %v328
        %v991 = vmul.f32 %v985, %v329
        %v992 = vmul.f32 %v986, %v328
        %v993 = vmul.f32 %v987, %v329
        %v994 = vmul.f32 %v826, %v826
        %v995 = vmul.f32 %v827, %v827
        %v996 = vmul.f32 %v828, %v828
        %v997 = vmul.f32 %v829, %v829
        %v998 = vmul.f32 %v830, %v830
        %v999 = vmul.f32 %v831, %v831
        %v1000 = vsub.f32 %v988, %v994
        %v1001 = vsub.f32 %v989, %v995
        %v1002 = vsub.f32 %v990, %v996
        %v1003 = vsub.f32 %v991, %v997
        %v1004 = vsub.f32 %v992, %v998
        %v1005 = vsub.f32 %v993, %v999
        %v1006 = vmul.f32 %v247, %v670
        %v1007 = vmul.f32 %v248, %v671
        %v1008 = vmul.f32 %v249, %v672
        %v1009 = vmul.f32 %v250, %v673
        %v1010 = vmul.f32 %v251, %v674
        %v1011 = vmul.f32 %v252, %v675
        %v1015 = vrot.slane %v1006, 1
        %v1016 = vrot.slane %v1008, 1
        %v1017 = vrot.slane %v1010, 1
        %v1024 = vrot.slane %v1006, 7
        %v1025 = vrot.slane %v1007, 7
        %v1026 = vsel %vm266, %v1024, %v1025
        %v1027 = vrot.slane %v1008, 7
        %v1028 = vrot.slane %v1009, 7
        %v1029 = vsel %vm266, %v1027, %v1028
        %v1030 = vrot.slane %v1010, 7
        %v1031 = vrot.slane %v1011, 7
        %v1032 = vsel %vm266, %v1030, %v1031
        %v1039 = vsel %vm266, %v1015, %v1024
        %v1040 = vsel %vm266, %v1016, %v1027
        %v1041 = vsel %vm266, %v1017, %v1030
        %v1042 = vrot.slane %v1007, 1
        %v1043 = vsel %vm273, %v1015, %v1042
        %v1044 = vrot.slane %v1009, 1
        %v1045 = vsel %vm273, %v1016, %v1044
        %v1046 = vrot.slane %v1011, 1
        %v1047 = vsel %vm273, %v1017, %v1046
        %v1057 = vsel %vm273, %v1042, %v1025
        %v1058 = vsel %vm273, %v1044, %v1028
        %v1059 = vsel %vm273, %v1046, %v1031
        %v1060 = vadd.f32 %v1006, %v1039
        %v1061 = vadd.f32 %v1007, %v1026
        %v1062 = vadd.f32 %v1008, %v1040
        %v1063 = vadd.f32 %v1009, %v1029
        %v1064 = vadd.f32 %v1010, %v1041
        %v1065 = vadd.f32 %v1011, %v1032
        %v1066 = vadd.f32 %v1060, %v1043
        %v1067 = vadd.f32 %v1061, %v1057
        %v1068 = vadd.f32 %v1062, %v1045
        %v1069 = vadd.f32 %v1063, %v1058
        %v1070 = vadd.f32 %v1064, %v1047
        %v1071 = vadd.f32 %v1065, %v1059
        %1078 = vrot.lane.b32.xlu0 %v1066, 127
        %v1079 = vpop.permute.xlu0 %1078
        %1080 = vrot.lane.b32.xlu0 %v1067, 127
        %v1081 = vpop.permute.xlu0 %1080
        %1082 = vrot.lane.b32.xlu0 %v1068, 127
        %v1083 = vpop.permute.xlu0 %1082
        %1084 = vrot.lane.b32.xlu0 %v1069, 127
        %v1085 = vpop.permute.xlu0 %1084
        %1086 = vrot.lane.b32.xlu0 %v1070, 127
        %v1087 = vpop.permute.xlu0 %1086
        %1088 = vrot.lane.b32.xlu0 %v1071, 127
        %v1089 = vpop.permute.xlu0 %1088
        %1096 = vrot.lane.b32.xlu0 %v1066, 1
        %v1097 = vpop.permute.xlu0 %1096
        %1098 = vrot.lane.b32.xlu0 %v1067, 1
        %v1099 = vpop.permute.xlu0 %1098
        %1100 = vrot.lane.b32.xlu0 %v1068, 1
        %v1101 = vpop.permute.xlu0 %1100
        %1102 = vrot.lane.b32.xlu0 %v1069, 1
        %v1103 = vpop.permute.xlu0 %1102
        %1104 = vrot.lane.b32.xlu0 %v1070, 1
        %v1105 = vpop.permute.xlu0 %1104
        %1106 = vrot.lane.b32.xlu0 %v1071, 1
        %v1107 = vpop.permute.xlu0 %1106
        %v1114 = vsel %vm292, %v1079, %v1097
        %v1115 = vsel %vm292, %v1081, %v1099
        %v1116 = vsel %vm292, %v1083, %v1101
        %v1117 = vsel %vm292, %v1085, %v1103
        %v1118 = vsel %vm292, %v1087, %v1105
        %v1119 = vsel %vm292, %v1089, %v1107
        %1120 = vset.pattern.permute.xlu0 14
        %1121 = vperm.xlu0 %1120, %v1066
        %v1122 = vpop.permute.xlu0 %1121
        %1124 = vset.pattern.permute.xlu0 14
        %1125 = vperm.xlu0 %1124, %v1067
        %v1126 = vpop.permute.xlu0 %1125
        %1128 = vset.pattern.permute.xlu0 14
        %1129 = vperm.xlu0 %1128, %v1068
        %v1130 = vpop.permute.xlu0 %1129
        %1132 = vset.pattern.permute.xlu0 14
        %1133 = vperm.xlu0 %1132, %v1069
        %v1134 = vpop.permute.xlu0 %1133
        %1136 = vset.pattern.permute.xlu0 14
        %1137 = vperm.xlu0 %1136, %v1070
        %v1138 = vpop.permute.xlu0 %1137
        %1140 = vset.pattern.permute.xlu0 14
        %1141 = vperm.xlu0 %1140, %v1071
        %v1142 = vpop.permute.xlu0 %1141
        %v1144 = vsel %vm447, %v1122, %v1079
        %v1145 = vsel %vm447, %v1126, %v1081
        %v1146 = vsel %vm447, %v1130, %v1083
        %v1147 = vsel %vm447, %v1134, %v1085
        %v1148 = vsel %vm447, %v1138, %v1087
        %v1149 = vsel %vm447, %v1142, %v1089
        %v1150 = vadd.f32 %v1066, %v1114
        %v1151 = vadd.f32 %v1067, %v1115
        %v1152 = vadd.f32 %v1068, %v1116
        %v1153 = vadd.f32 %v1069, %v1117
        %v1154 = vadd.f32 %v1070, %v1118
        %v1155 = vadd.f32 %v1071, %v1119
        %v1156 = vadd.f32 %v1150, %v1144
        %v1157 = vadd.f32 %v1151, %v1145
        %v1158 = vadd.f32 %v1152, %v1146
        %v1159 = vadd.f32 %v1153, %v1147
        %v1160 = vadd.f32 %v1154, %v1148
        %v1161 = vadd.f32 %v1155, %v1149
        %v1162 = vmul.f32 %v1156, %v328
        %v1163 = vmul.f32 %v1157, %v329
        %v1164 = vmul.f32 %v1158, %v328
        %v1165 = vmul.f32 %v1159, %v329
        %v1166 = vmul.f32 %v1160, %v328
        %v1167 = vmul.f32 %v1161, %v329
        %v1168 = vmul.f32 %v490, %v826
        %v1169 = vmul.f32 %v491, %v827
        %v1170 = vmul.f32 %v492, %v828
        %v1171 = vmul.f32 %v493, %v829
        %v1172 = vmul.f32 %v494, %v830
        %v1173 = vmul.f32 %v495, %v831
        %v1174 = vsub.f32 %v1162, %v1168
        %v1175 = vsub.f32 %v1163, %v1169
        %v1176 = vsub.f32 %v1164, %v1170
        %v1177 = vsub.f32 %v1165, %v1171
        %v1178 = vsub.f32 %v1166, %v1172
        %v1179 = vsub.f32 %v1167, %v1173
        %v1180 = vmul.f32 %v1174, 2.0
        %v1181 = vmul.f32 %v1175, 2.0
        %v1182 = vmul.f32 %v1176, 2.0
        %v1183 = vmul.f32 %v1177, 2.0
        %v1184 = vmul.f32 %v1178, 2.0
        %v1185 = vmul.f32 %v1179, 2.0
        %v1186 = vadd.f32 %v1180, 0.0009
        %v1187 = vadd.f32 %v1181, 0.0009
        %v1188 = vadd.f32 %v1182, 0.0009
        %v1189 = vadd.f32 %v1183, 0.0009
        %v1190 = vadd.f32 %v1184, 0.0009
        %v1191 = vadd.f32 %v1185, 0.0009
        %v1192 = vmul.f32 %v490, 2.0
        %v1193 = vmul.f32 %v491, 2.0
        %v1194 = vmul.f32 %v492, 2.0
        %v1195 = vmul.f32 %v493, 2.0
        %v1196 = vmul.f32 %v494, 2.0
        %v1197 = vmul.f32 %v495, 2.0
        %v1198 = vmul.f32 %v1192, %v826
        %v1199 = vmul.f32 %v1193, %v827
        %v1200 = vmul.f32 %v1194, %v828
        %v1201 = vmul.f32 %v1195, %v829
        %v1202 = vmul.f32 %v1196, %v830
        %v1203 = vmul.f32 %v1197, %v831
        %v1204 = vadd.f32 %v1198, 0.0001
        %v1205 = vadd.f32 %v1199, 0.0001
        %v1206 = vadd.f32 %v1200, 0.0001
        %v1207 = vadd.f32 %v1201, 0.0001
        %v1208 = vadd.f32 %v1202, 0.0001
        %v1209 = vadd.f32 %v1203, 0.0001
        %v1210 = vmul.f32 %v1186, %v1204
        %v1211 = vmul.f32 %v1187, %v1205
        %v1212 = vmul.f32 %v1188, %v1206
        %v1213 = vmul.f32 %v1189, %v1207
        %v1214 = vmul.f32 %v1190, %v1208
        %v1215 = vmul.f32 %v1191, %v1209
        %v1216 = vadd.f32 %v664, %v1000
        %v1217 = vadd.f32 %v665, %v1001
        %v1218 = vadd.f32 %v666, %v1002
        %v1219 = vadd.f32 %v667, %v1003
        %v1220 = vadd.f32 %v668, %v1004
        %v1221 = vadd.f32 %v669, %v1005
        %v1222 = vadd.f32 %v1216, 0.0009
        %v1223 = vadd.f32 %v1217, 0.0009
        %v1224 = vadd.f32 %v1218, 0.0009
        %v1225 = vadd.f32 %v1219, 0.0009
        %v1226 = vadd.f32 %v1220, 0.0009
        %v1227 = vadd.f32 %v1221, 0.0009
        %v1228 = vadd.f32 %v658, %v994
        %v1229 = vadd.f32 %v659, %v995
        %v1230 = vadd.f32 %v660, %v996
        %v1231 = vadd.f32 %v661, %v997
        %v1232 = vadd.f32 %v662, %v998
        %v1233 = vadd.f32 %v663, %v999
        %v1234 = vadd.f32 %v1228, 0.0001
        %v1235 = vadd.f32 %v1229, 0.0001
        %v1236 = vadd.f32 %v1230, 0.0001
        %v1237 = vadd.f32 %v1231, 0.0001
        %v1238 = vadd.f32 %v1232, 0.0001
        %v1239 = vadd.f32 %v1233, 0.0001
        %v1240 = vmul.f32 %v1222, %v1234
        %v1241 = vmul.f32 %v1223, %v1235
        %v1242 = vmul.f32 %v1224, %v1236
        %v1243 = vmul.f32 %v1225, %v1237
        %v1244 = vmul.f32 %v1226, %v1238
        %v1245 = vmul.f32 %v1227, %v1239
        %v1246 = vrcp.pop %v1240
        %v1247 = vmul.f32 %v1210, %v1246
        %v1248 = vrcp.pop %v1241
        %v1249 = vmul.f32 %v1211, %v1248
        %v1250 = vrcp.pop %v1242
        %v1251 = vmul.f32 %v1212, %v1250
        %v1252 = vrcp.pop %v1243
        %v1253 = vmul.f32 %v1213, %v1252
        %v1254 = vrcp.pop %v1244
        %v1255 = vmul.f32 %v1214, %v1254
        %v1256 = vrcp.pop %v1245
        %v1257 = vmul.f32 %v1215, %v1256
        %v1258 = vsub.f32 1.0, %v1247
        %v1259 = vsub.f32 1.0, %v1249
        %v1260 = vsub.f32 1.0, %v1251
        %v1261 = vsub.f32 1.0, %v1253
        %v1262 = vsub.f32 1.0, %v1255
        %v1263 = vsub.f32 1.0, %v1257
        %v1264 = vmul.f32 %v1258, 0.5
        %v1265 = vmul.f32 %v1259, 0.5
        %v1266 = vmul.f32 %v1260, 0.5
        %v1267 = vmul.f32 %v1261, 0.5
        %v1268 = vmul.f32 %v1262, 0.5
        %v1269 = vmul.f32 %v1263, 0.5
        %v1270 = vmax.f32 %v1264, 0.0
        %v1271 = vmax.f32 %v1265, 0.0
        %v1272 = vmax.f32 %v1266, 0.0
        %v1273 = vmax.f32 %v1267, 0.0
        %v1274 = vmax.f32 %v1268, 0.0
        %v1275 = vmax.f32 %v1269, 0.0
        %v1276 = vmin.f32 %v1270, 1.0
        %v1277 = vmin.f32 %v1271, 1.0
        %v1278 = vmin.f32 %v1272, 1.0
        %v1279 = vmin.f32 %v1273, 1.0
        %v1280 = vmin.f32 %v1274, 1.0
        %v1281 = vmin.f32 %v1275, 1.0
        %1282 = vst [vmem:[%s224] sm:$0xff] %v1276
        %1283 = vst [vmem:[%s224 + $0x8] sm:$0xff] %v1277
        %1284 = vst [vmem:[%s224 + $0x10] sm:$0xff] %v1278
        %1285 = vst [vmem:[%s224 + $0x18] sm:$0xff] %v1279
        %1286 = vst [vmem:[%s224 + $0x20] sm:$0xff] %v1280
        %1287 = vst [vmem:[%s224 + $0x28] sm:$0xff] %v1281
        %s1288 = sand.u32 %s108, 1
        %s1289 = scalar_lea.sflag [#allocation3], %s1288
        %s1290 = sand.u32 %s108, 1
        %s1291 = smul.addr %s1290, 48
        %s1292 = scalar_lea.vmem [#allocation2], %s1291
        %s1293 = sand.u32 %s134, 1
        %s1294 = scalar_lea.sflag [#allocation5], %s1293
        %s1295 = sand.u32 %s134, 1
        %s1296 = smul.addr %s1295, 16
        %s1297 = scalar_lea.vmem [#allocation4], %s1296
        // Predicated region
        $region33: #{weighted_ssim.1} parent=31 // pred_check
          %p1298 = pneg %p118
        $region34: #{weighted_ssim.1} parent=31 // pred_check_branch
          %1300 = sbr.rel (%p1298) target = $region36
        $region35: #{weighted_ssim.1} parent=31 // pred_region
          %s1302 = ssub.s32 768, 768
          %1303 = vsyncadd %s1289, %s1302
          %s1304 = smul.addr %s22, 6
          %s1305 = smul.addr %s1304, 128
          %s1306 = scalar_lea.hbm %s3, %s1305
          %s1307 = sshll.u32 %s1292, 4
          %s1308 = int_to_ptr.vmem [resolvable:$true] %s1307
          %1313 = dma.vmem_to_hbm [thread:$0]  %s1308, 768, %s1306, %s1289, 128, 128, 8
        $region36: #{weighted_ssim.1} parent=31 // pred_fallthru
          _
        // Predicated region
        $region37: #{weighted_ssim.1} parent=31 // pred_check
          %p1314 = pneg %p144
        $region38: #{weighted_ssim.1} parent=31 // pred_check_branch
          %1316 = sbr.rel (%p1314) target = $region40
        $region39: #{weighted_ssim.1} parent=31 // pred_region
          %s1318 = ssub.s32 256, 256
          %1319 = vsyncadd %s1294, %s1318
          %s1320 = smul.addr %s22, 2
          %s1321 = smul.addr %s1320, 128
          %s1322 = scalar_lea.hbm %s4, %s1321
          %s1323 = sshll.u32 %s1297, 4
          %s1324 = int_to_ptr.vmem [resolvable:$true] %s1323
          %1329 = dma.vmem_to_hbm [thread:$0]  %s1324, 256, %s1322, %s1294, 128, 128, 8
        $region40: #{weighted_ssim.1} parent=31 // pred_fallthru
          _
      $region32: #{weighted_ssim.1} parent=5 // pred_fallthru
        _
      %p1330 = scmp.le.s32.totalorder 2, %s17
      // Predicated region
      $region41: #{weighted_ssim.1} parent=5 // pred_check
        %p1331 = pneg %p1330
      $region42: #{weighted_ssim.1} parent=5 // pred_check_branch
        %1333 = sbr.rel (%p1331) target = $region44
      $region43: #{weighted_ssim.1} parent=5 // pred_region
        %s1334 = ssub.s32 %s17, 2
        // Predicated region
        $region45: #{weighted_ssim.1} parent=43 // pred_check
          %p1335 = pneg %p124
        $region46: #{weighted_ssim.1} parent=43 // pred_check_branch
          %1337 = sbr.rel (%p1335) target = $region48
        $region47: #{weighted_ssim.1} parent=43 // pred_region
          %s1338 = sand.u32 %s109, 1
          %s1339 = scalar_lea.sflag [#allocation3], %s1338
          %s1340 = sand.u32 %s109, 1
          %s1341 = smul.addr %s1340, 48
          %s1342 = scalar_lea.vmem [#allocation2], %s1341
          %1343 = dma.done %s1339, 768
        $region48: #{weighted_ssim.1} parent=43 // pred_fallthru
          _
        // Predicated region
        $region49: #{weighted_ssim.1} parent=43 // pred_check
          %p1344 = pneg %p150
        $region50: #{weighted_ssim.1} parent=43 // pred_check_branch
          %1346 = sbr.rel (%p1344) target = $region52
        $region51: #{weighted_ssim.1} parent=43 // pred_region
          %s1347 = sand.u32 %s135, 1
          %s1348 = scalar_lea.sflag [#allocation5], %s1347
          %s1349 = sand.u32 %s135, 1
          %s1350 = smul.addr %s1349, 16
          %s1351 = scalar_lea.vmem [#allocation4], %s1350
          %1352 = dma.done %s1348, 256
        $region52: #{weighted_ssim.1} parent=43 // pred_fallthru
          _
      $region44: #{weighted_ssim.1} parent=5 // pred_fallthru
        _
    $region6: #{weighted_ssim.1} parent=1 // loop_footer
      %s21 = sadd.s32 1, %s17
    $region7: #{weighted_ssim.1} parent=1 // loop_footer_branch
      %16 = sbr.rel target = $region3
    $region8: #{weighted_ssim.1} parent=1 // loop_exit
      _
    %1353 = vsyncpa [#allocation3], 1
    %s1354 = scalar_lea.sflag [#allocation3], 1
    %1355 = vsyncpa %s1354, 1
    %1356 = vsyncpa [#allocation5], 1
    %s1357 = scalar_lea.sflag [#allocation5], 1
    %1358 = vsyncpa %s1357, 1

</llo_original>
